<compile_context>
chip_gen: v5e
topology: v5e:2x2
jax: 0.10.0
libtpu: 0.0.40
codegen_flags: <defaults>
</compile_context>

<pallas_src>
import jax
import jax.numpy as jnp
from jax import lax
from jax.experimental import pallas as pl
from jax.experimental.pallas import tpu as pltpu

# ---- problem sizes (small, consistent with the module's __init__) ----------
B, S = 2, 8              # batch per branch, sequence length
BB = 2 * B               # combined batch (branch fusion)
ROWS = 2 * BB            # fused row slab: fwd rows + bwd rows
VOCAB = 32               # vocab_size
EMBED = 16               # embed_size
HIDDEN = 32              # hidden_size
H4 = 4 * HIDDEN          # per-direction gate width (= 128 lanes, one vreg)
H8 = 8 * HIDDEN          # both directions
FC1, OUT = 128, 64       # fc head sizes (fixed by the module)
COS_EPS = 1e-8
BN_EPS = 1e-5


def siamese_kernel(
    tok_ref,        # (S*BB, 1) int32 — time-major flattened [code1 ; code2]
    tab0_ref,       # (VOCAB, 8H)  embedding ⨉ layer-0 W_ih (+bias), pre-scaled
    w0hh_ref,       # (2H, 4H)     layer-0 W_hh stacked [fwd ; bwd], pre-scaled
    w1x_ref,        # (2H, 8H)     layer-1 W_ih both dirs, pre-scaled
    b1_ref,         # (1, 8H)      layer-1 combined bias both dirs, pre-scaled
    w1hh_ref,       # (2H, 4H)     layer-1 W_hh stacked, pre-scaled
    fc1w_ref, fc1b_ref,   # (2H, 128), (1, 128)  — BN(eval) folded in
    fc2w_ref, fc2b_ref,   # (128, 64), (1, 64)
    out_ref,        # (B, 1) cosine similarity
    # scratch
    slab0_s,        # (S, ROWS, 4H) direction-selected layer-0 x-projection
    slab1_s,        # (S, ROWS, 4H) direction-selected layer-1 x-projection
    out0_s,         # (S*BB, 2H)    layer-0 output ([:H]=fwd, [H:]=bwd), flat
):
    # ---- hoisted constants --------------------------------------------------
    lane4 = lax.broadcasted_iota(jnp.int32, (1, H4), 1)
    # i/f/o lanes get the sigmoid fix-up (0.5*tanh + 0.5); g lanes stay tanh.
    ifo_mask = jnp.logical_or(lane4 < 2 * HIDDEN, lane4 >= 3 * HIDDEN)

    row_i = lax.broadcasted_iota(jnp.int32, (ROWS, 2 * HIDDEN), 0)
    lane_i = lax.broadcasted_iota(jnp.int32, (ROWS, 2 * HIDDEN), 1)
    # packed-h layout: fwd rows live in lanes [:H], bwd rows in lanes [H:]
    dir_mask = jnp.where((row_i < BB) == (lane_i < HIDDEN), 1.0, 0.0)

    w0hh = w0hh_ref[...]
    w1hh = w1hh_ref[...]

    # ---- layer-0 x-projection for ALL steps: one MXU pass -------------------
    # (embedding table + W_ih + bias already folded into tab0 host-side)
    tok = tok_ref[...]                                               # (S*BB, 1)
    iota_v = lax.broadcasted_iota(jnp.int32, (S * BB, VOCAB), 1)
    onehot = (tok == iota_v).astype(jnp.float32)                     # (S*BB, V)
    proj0 = jnp.dot(onehot, tab0_ref[...],
                    preferred_element_type=jnp.float32)              # (S*BB, 8H)

    # pre-assemble direction-selected per-step slab: one (8,128) vreg per step
    for t in range(S):
        rt = S - 1 - t
        slab0_s[t, :BB, :] = proj0[t * BB:(t + 1) * BB, :H4]         # fwd @ t
        slab0_s[t, BB:, :] = proj0[rt * BB:(rt + 1) * BB, H4:]       # bwd @ rt

    def fused_cell(gx, h2, c, whh):
        """One fused (both-branch, both-direction) LSTM step.

        gx:  (ROWS, 4H) pre-scaled x-projection (+bias), direction-selected.
        h2:  (ROWS, 2H) packed hidden (fwd rows use lanes [:H], bwd [H:]).
        whh: (2H, 4H)   stacked recurrent weights [W_hh_fwd.T ; W_hh_bwd.T].
        Gate order i, f, g, o; i/f/o pre-activations are pre-scaled by 0.5 so
        one full-vreg tanh + masked affine fix-up yields all activations.
        """
        gates = gx + jnp.dot(h2, whh, preferred_element_type=jnp.float32)
        y = jnp.tanh(gates)                                  # one 128-lane EUP push
        acts = jnp.where(ifo_mask, 0.5 * y + 0.5, y)         # sigmoid on i/f/o
        i = acts[:, 0 * HIDDEN:1 * HIDDEN]
        f = acts[:, 1 * HIDDEN:2 * HIDDEN]
        g = acts[:, 2 * HIDDEN:3 * HIDDEN]
        o = acts[:, 3 * HIDDEN:4 * HIDDEN]
        c_new = f * c + i * g
        h_new = o * jnp.tanh(c_new)
        h2_new = jnp.concatenate([h_new, h_new], axis=1) * dir_mask  # repack
        return h_new, h2_new, c_new

    # ---- bi-LSTM layer 0 (fully unrolled, static indices) -------------------
    h2 = jnp.zeros((ROWS, 2 * HIDDEN), jnp.float32)
    c = jnp.zeros((ROWS, HIDDEN), jnp.float32)
    for t in range(S):
        rt = S - 1 - t
        h, h2, c = fused_cell(slab0_s[t], h2, c, w0hh)
        out0_s[t * BB:(t + 1) * BB, :HIDDEN] = h[:BB]        # fwd hidden @ t
        out0_s[rt * BB:(rt + 1) * BB, HIDDEN:] = h[BB:]      # bwd hidden @ rt

    # (inter-layer dropout p=0.3 is identity in eval mode)

    # ---- layer-1 x-projection for ALL steps: one MXU pass -------------------
    proj1 = jnp.dot(out0_s[...], w1x_ref[...],
                    preferred_element_type=jnp.float32) + b1_ref[...]  # (S*BB, 8H)
    for t in range(S):
        rt = S - 1 - t
        slab1_s[t, :BB, :] = proj1[t * BB:(t + 1) * BB, :H4]
        slab1_s[t, BB:, :] = proj1[rt * BB:(rt + 1) * BB, H4:]

    # ---- bi-LSTM layer 1: only the final hidden of each direction is needed -
    h2 = jnp.zeros((ROWS, 2 * HIDDEN), jnp.float32)
    c = jnp.zeros((ROWS, HIDDEN), jnp.float32)
    for t in range(S):
        _, h2, c = fused_cell(slab1_s[t], h2, c, w1hh)

    # torch.cat((hidden[-2], hidden[-1]), dim=1): fwd rows hold lanes [:H],
    # bwd rows hold lanes [H:] (zeros elsewhere) -> a single add is the concat.
    hidden = h2[:BB, :] + h2[BB:, :]                                  # (BB, 2H)

    # ---- fc head (eval-mode BN folded into fc1; Dropout identity) -----------
    z = jnp.dot(hidden, fc1w_ref[...],
                preferred_element_type=jnp.float32) + fc1b_ref[...]   # (BB, 128)
    z = jnp.maximum(z, 0.0)                                           # ReLU
    e = jnp.dot(z, fc2w_ref[...],
                preferred_element_type=jnp.float32) + fc2b_ref[...]   # (BB, 64)

    # split branches only here
    e1 = e[:B]
    e2 = e[B:]

    # cosine similarity along dim=1: dot / max(||x1||*||x2||, eps)  (torch form)
    dot = jnp.sum(e1 * e2, axis=1, keepdims=True)
    den = jnp.sqrt(jnp.sum(e1 * e1, axis=1, keepdims=True)
                   * jnp.sum(e2 * e2, axis=1, keepdims=True))
    out_ref[...] = dot / jnp.maximum(den, COS_EPS)


def siamese_forward(code1, code2, fused_params):
    """code1, code2: (B, S) int32 token ids (batch_first, like the module)."""
    # combined batch, time-major, flattened host-side (avoids in-kernel reshape)
    tok = (jnp.concatenate([code1, code2], axis=0).T
           .reshape(S * BB, 1).astype(jnp.int32))
    inputs = [tok] + list(fused_params)
    out = pl.pallas_call(
        siamese_kernel,
        out_shape=jax.ShapeDtypeStruct((B, 1), jnp.float32),
        in_specs=[pl.BlockSpec(memory_space=pltpu.MemorySpace.VMEM)] * len(inputs),
        out_specs=pl.BlockSpec(memory_space=pltpu.MemorySpace.VMEM),
        scratch_shapes=[
            pltpu.VMEM((S, ROWS, H4), jnp.float32),          # slab0
            pltpu.VMEM((S, ROWS, H4), jnp.float32),          # slab1
            pltpu.VMEM((S * BB, 2 * HIDDEN), jnp.float32),   # layer-0 output
        ],
    )(*inputs)
    return out.reshape(B)


def init_params(key):
    """Synthetic init mirroring PyTorch default shapes/inits.

    Returns (fused, raw):
      fused -- kernel-layout tensors (embedding folded into layer-0 table,
               biases combined, 0.5 sigmoid pre-scale folded into i/f/o gate
               columns, eval-mode BN folded into fc1).
      raw   -- plain per-direction weights for the pure-JAX reference.
    """
    keys = iter(jax.random.split(key, 24))

    def unif(k, shape, fan):
        bound = 1.0 / (fan ** 0.5)
        return jax.random.uniform(k, shape, jnp.float32, -bound, bound)

    emb = jax.random.normal(next(keys), (VOCAB, EMBED), jnp.float32)

    def lstm_dir(in_dim):
        return dict(
            w_ih=unif(next(keys), (4 * HIDDEN, in_dim), HIDDEN),
            w_hh=unif(next(keys), (4 * HIDDEN, HIDDEN), HIDDEN),
            b=(unif(next(keys), (4 * HIDDEN,), HIDDEN)
               + unif(next(keys), (4 * HIDDEN,), HIDDEN)),   # b_ih + b_hh
        )

    l0f, l0b = lstm_dir(EMBED), lstm_dir(EMBED)
    l1f, l1b = lstm_dir(2 * HIDDEN), lstm_dir(2 * HIDDEN)

    fc1_w = unif(next(keys), (FC1, 2 * HIDDEN), 2 * HIDDEN)
    fc1_b = unif(next(keys), (FC1,), 2 * HIDDEN)
    fc2_w = unif(next(keys), (OUT, FC1), FC1)
    fc2_b = unif(next(keys), (OUT,), FC1)

    # BatchNorm1d(128), eval mode, default init: gamma=1, beta=0, mean=0, var=1
    bn_scale = 1.0 / jnp.sqrt(1.0 + BN_EPS)

    # 0.5 pre-scale on i/f/o gate columns (sigmoid(x) = 0.5*tanh(x/2) + 0.5)
    s4 = jnp.concatenate([jnp.full((2 * HIDDEN,), 0.5, jnp.float32),
                          jnp.ones((HIDDEN,), jnp.float32),
                          jnp.full((HIDDEN,), 0.5, jnp.float32)])
    s8 = jnp.concatenate([s4, s4])

    # layer-0: fold embedding + W_ih + bias into one (VOCAB, 8H) table
    tab0 = jnp.concatenate(
        [emb @ l0f["w_ih"].T + l0f["b"][None, :],
         emb @ l0b["w_ih"].T + l0b["b"][None, :]], axis=1) * s8[None, :]
    # recurrent weights stacked for packed-h layout: (2H, 4H)
    w0hh = jnp.concatenate([l0f["w_hh"].T, l0b["w_hh"].T], axis=0) * s4[None, :]
    w1hh = jnp.concatenate([l1f["w_hh"].T, l1b["w_hh"].T], axis=0) * s4[None, :]
    # layer-1 batched input projection: (2H, 8H) + (1, 8H) bias
    w1x = jnp.concatenate([l1f["w_ih"].T, l1b["w_ih"].T], axis=1) * s8[None, :]
    b1 = (jnp.concatenate([l1f["b"], l1b["b"]]) * s8).reshape(1, H8)

    # fold eval-mode BN into fc1
    fc1w = fc1_w.T * bn_scale
    fc1b = (fc1_b * bn_scale).reshape(1, FC1)
    fc2w = fc2_w.T
    fc2b = fc2_b.reshape(1, OUT)

    fused = [tab0, w0hh, w1x, b1, w1hh, fc1w, fc1b, fc2w, fc2b]
    raw = dict(emb=emb, l0f=l0f, l0b=l0b, l1f=l1f, l1b=l1b,
               fc1_w=fc1_w, fc1_b=fc1_b, fc2_w=fc2_w, fc2_b=fc2_b)
    return fused, raw


def reference_forward(code1, code2, raw):
    """Pure-JAX reference (eval-mode module semantics) for self-validation."""
    def run_dir(x_seq, p):                                    # x_seq: (B, S, F)
        h = jnp.zeros((x_seq.shape[0], HIDDEN), jnp.float32)
        c = jnp.zeros_like(h)
        hs = []
        for t in range(x_seq.shape[1]):
            g = x_seq[:, t] @ p["w_ih"].T + h @ p["w_hh"].T + p["b"][None, :]
            i = jax.nn.sigmoid(g[:, :HIDDEN])
            f = jax.nn.sigmoid(g[:, HIDDEN:2 * HIDDEN])
            gg = jnp.tanh(g[:, 2 * HIDDEN:3 * HIDDEN])
            o = jax.nn.sigmoid(g[:, 3 * HIDDEN:])
            c = f * c + i * gg
            h = o * jnp.tanh(c)
            hs.append(h)
        return jnp.stack(hs, axis=1), h

    def bilayer(x_seq, pf, pb):
        of, hf = run_dir(x_seq, pf)
        ob, hb = run_dir(x_seq[:, ::-1], pb)
        return jnp.concatenate([of, ob[:, ::-1]], axis=-1), hf, hb

    def branch(tokens):
        x = raw["emb"][tokens]                                 # (B, S, E)
        out0, _, _ = bilayer(x, raw["l0f"], raw["l0b"])
        _, h1f, h1b = bilayer(out0, raw["l1f"], raw["l1b"])
        hid = jnp.concatenate([h1f, h1b], axis=1)
        z = hid @ raw["fc1_w"].T + raw["fc1_b"][None, :]
        z = z / jnp.sqrt(1.0 + BN_EPS)                         # eval-mode BN
        z = jnp.maximum(z, 0.0)
        return z @ raw["fc2_w"].T + raw["fc2_b"][None, :]

    e1, e2 = branch(code1), branch(code2)
    dot = jnp.sum(e1 * e2, axis=1)
    den = jnp.sqrt(jnp.sum(e1 * e1, axis=1) * jnp.sum(e2 * e2, axis=1))
    return dot / jnp.maximum(den, COS_EPS)


if __name__ == "__main__":
    key = jax.random.PRNGKey(0)
    kp, k1, k2 = jax.random.split(key, 3)
    fused, raw = init_params(kp)
    code1 = jax.random.randint(k1, (B, S), 0, VOCAB, dtype=jnp.int32)
    code2 = jax.random.randint(k2, (B, S), 0, VOCAB, dtype=jnp.int32)

    sim = jax.block_until_ready(siamese_forward(code1, code2, fused))
    assert sim.shape == (B,) and sim.dtype == jnp.float32

    ref = jax.block_until_ready(reference_forward(code1, code2, raw))
    assert jnp.allclose(sim, ref, rtol=2e-3, atol=2e-3), (sim, ref)
    print("KERNEL_OK")
</pallas_src>

<mosaic_0001>
module attributes {stable_mosaic.version = 11 : i64} {
  func.func @siamese_kernel(%arg0: memref<32x1xi32, #tpu.memory_space<vmem>>, %arg1: memref<32x256xf32, #tpu.memory_space<vmem>>, %arg2: memref<64x128xf32, #tpu.memory_space<vmem>>, %arg3: memref<64x256xf32, #tpu.memory_space<vmem>>, %arg4: memref<1x256xf32, #tpu.memory_space<vmem>>, %arg5: memref<64x128xf32, #tpu.memory_space<vmem>>, %arg6: memref<64x128xf32, #tpu.memory_space<vmem>>, %arg7: memref<1x128xf32, #tpu.memory_space<vmem>>, %arg8: memref<128x64xf32, #tpu.memory_space<vmem>>, %arg9: memref<1x64xf32, #tpu.memory_space<vmem>>, %arg10: memref<2x1xf32, #tpu.memory_space<vmem>>, %arg11: memref<8x8x128xf32, #tpu.memory_space<vmem>>, %arg12: memref<8x8x128xf32, #tpu.memory_space<vmem>>, %arg13: memref<32x64xf32, #tpu.memory_space<vmem>>) attributes {dimension_semantics = [], scalar_prefetch = 0 : i64, scratch_operands = 3 : i64, tpu.core_type = #tpu.core_type<tc>} {
    %0 = tpu.iota {dimensions = array<i32: 1>} : vector<1x128xi32>
    %c64_i32 = arith.constant 64 : i32
    %1 = vector.broadcast %c64_i32 : i32 to vector<1x128xi32>
    %2 = arith.cmpi slt, %0, %1 : vector<1x128xi32>
    %c96_i32 = arith.constant 96 : i32
    %3 = vector.broadcast %c96_i32 : i32 to vector<1x128xi32>
    %4 = arith.cmpi sge, %0, %3 : vector<1x128xi32>
    %5 = arith.ori %2, %4 : vector<1x128xi1>
    %6 = tpu.iota {dimensions = array<i32: 0>} : vector<8x64xi32>
    %7 = tpu.iota {dimensions = array<i32: 1>} : vector<8x64xi32>
    %c4_i32 = arith.constant 4 : i32
    %8 = vector.broadcast %c4_i32 : i32 to vector<8x64xi32>
    %9 = arith.cmpi slt, %6, %8 : vector<8x64xi32>
    %c32_i32 = arith.constant 32 : i32
    %10 = vector.broadcast %c32_i32 : i32 to vector<8x64xi32>
    %11 = arith.cmpi slt, %7, %10 : vector<8x64xi32>
    %12 = arith.xori %9, %11 : vector<8x64xi1>
    %cst = arith.constant dense<true> : vector<8x64xi1>
    %13 = arith.xori %12, %cst : vector<8x64xi1>
    %cst_0 = arith.constant 1.000000e+00 : f32
    %cst_1 = arith.constant 0.000000e+00 : f32
    %14 = vector.broadcast %cst_0 : f32 to vector<8x64xf32>
    %15 = vector.broadcast %cst_1 : f32 to vector<8x64xf32>
    %16 = arith.select %13, %14, %15 : vector<8x64xi1>, vector<8x64xf32>
    %c0 = arith.constant 0 : index
    %c0_2 = arith.constant 0 : index
    %17 = vector.load %arg2[%c0, %c0_2] : memref<64x128xf32, #tpu.memory_space<vmem>>, vector<64x128xf32>
    %c0_3 = arith.constant 0 : index
    %c0_4 = arith.constant 0 : index
    %18 = vector.load %arg5[%c0_3, %c0_4] : memref<64x128xf32, #tpu.memory_space<vmem>>, vector<64x128xf32>
    %c0_5 = arith.constant 0 : index
    %c0_6 = arith.constant 0 : index
    %19 = vector.load %arg0[%c0_5, %c0_6] : memref<32x1xi32, #tpu.memory_space<vmem>>, vector<32x1xi32>
    %20 = tpu.iota {dimensions = array<i32: 1>} : vector<32x32xi32>
    %21 = vector.broadcast %19 : vector<32x1xi32> to vector<32x32xi32>
    %22 = arith.cmpi eq, %21, %20 : vector<32x32xi32>
    %23 = arith.extui %22 : vector<32x32xi1> to vector<32x32xi32>
    %24 = arith.sitofp %23 : vector<32x32xi32> to vector<32x32xf32>
    %c0_7 = arith.constant 0 : index
    %c0_8 = arith.constant 0 : index
    %25 = vector.load %arg1[%c0_7, %c0_8] : memref<32x256xf32, #tpu.memory_space<vmem>>, vector<32x256xf32>
    %cst_9 = arith.constant dense<0.000000e+00> : vector<32x256xf32>
    %26 = tpu.matmul %24, %25, %cst_9 {dimension_numbers = #tpu.dot_dimension_numbers<[1], [0], [0], [1], [0, 0, 1, 1], [], []>} : vector<32x32xf32>, vector<32x256xf32>, vector<32x256xf32> -> vector<32x256xf32>
    %27 = vector.extract_strided_slice %26 {offsets = [0, 0], sizes = [4, 128], strides = [1, 1]} : vector<32x256xf32> to vector<4x128xf32>
    %c0_10 = arith.constant 0 : index
    %c0_11 = arith.constant 0 : index
    %c0_12 = arith.constant 0 : index
    %28 = vector.load %arg11[%c0_10, %c0_11, %c0_12] : memref<8x8x128xf32, #tpu.memory_space<vmem>>, vector<1x4x128xf32>
    %29 = vector.shape_cast %28 : vector<1x4x128xf32> to vector<4x128xf32>
    %30 = vector.shape_cast %27 : vector<4x128xf32> to vector<1x4x128xf32>
    tpu.vector_store %arg11[%c0_10, %c0_11, %c0_12], %30 {strides = array<i32>} : memref<8x8x128xf32, #tpu.memory_space<vmem>>, vector<1x4x128xf32>,
    %31 = vector.extract_strided_slice %26 {offsets = [28, 128], sizes = [4, 128], strides = [1, 1]} : vector<32x256xf32> to vector<4x128xf32>
    %c0_13 = arith.constant 0 : index
    %c4 = arith.constant 4 : index
    %c0_14 = arith.constant 0 : index
    %32 = vector.load %arg11[%c0_13, %c4, %c0_14] : memref<8x8x128xf32, #tpu.memory_space<vmem>>, vector<1x4x128xf32>
    %33 = vector.shape_cast %32 : vector<1x4x128xf32> to vector<4x128xf32>
    %34 = vector.shape_cast %31 : vector<4x128xf32> to vector<1x4x128xf32>
    tpu.vector_store %arg11[%c0_13, %c4, %c0_14], %34 {strides = array<i32>} : memref<8x8x128xf32, #tpu.memory_space<vmem>>, vector<1x4x128xf32>,
    %35 = vector.extract_strided_slice %26 {offsets = [4, 0], sizes = [4, 128], strides = [1, 1]} : vector<32x256xf32> to vector<4x128xf32>
    %c1 = arith.constant 1 : index
    %c0_15 = arith.constant 0 : index
    %c0_16 = arith.constant 0 : index
    %36 = vector.load %arg11[%c1, %c0_15, %c0_16] : memref<8x8x128xf32, #tpu.memory_space<vmem>>, vector<1x4x128xf32>
    %37 = vector.shape_cast %36 : vector<1x4x128xf32> to vector<4x128xf32>
    %38 = vector.shape_cast %35 : vector<4x128xf32> to vector<1x4x128xf32>
    tpu.vector_store %arg11[%c1, %c0_15, %c0_16], %38 {strides = array<i32>} : memref<8x8x128xf32, #tpu.memory_space<vmem>>, vector<1x4x128xf32>,
    %39 = vector.extract_strided_slice %26 {offsets = [24, 128], sizes = [4, 128], strides = [1, 1]} : vector<32x256xf32> to vector<4x128xf32>
    %c1_17 = arith.constant 1 : index
    %c4_18 = arith.constant 4 : index
    %c0_19 = arith.constant 0 : index
    %40 = vector.load %arg11[%c1_17, %c4_18, %c0_19] : memref<8x8x128xf32, #tpu.memory_space<vmem>>, vector<1x4x128xf32>
    %41 = vector.shape_cast %40 : vector<1x4x128xf32> to vector<4x128xf32>
    %42 = vector.shape_cast %39 : vector<4x128xf32> to vector<1x4x128xf32>
    tpu.vector_store %arg11[%c1_17, %c4_18, %c0_19], %42 {strides = array<i32>} : memref<8x8x128xf32, #tpu.memory_space<vmem>>, vector<1x4x128xf32>,
    %43 = vector.extract_strided_slice %26 {offsets = [8, 0], sizes = [4, 128], strides = [1, 1]} : vector<32x256xf32> to vector<4x128xf32>
    %c2 = arith.constant 2 : index
    %c0_20 = arith.constant 0 : index
    %c0_21 = arith.constant 0 : index
    %44 = vector.load %arg11[%c2, %c0_20, %c0_21] : memref<8x8x128xf32, #tpu.memory_space<vmem>>, vector<1x4x128xf32>
    %45 = vector.shape_cast %44 : vector<1x4x128xf32> to vector<4x128xf32>
    %46 = vector.shape_cast %43 : vector<4x128xf32> to vector<1x4x128xf32>
    tpu.vector_store %arg11[%c2, %c0_20, %c0_21], %46 {strides = array<i32>} : memref<8x8x128xf32, #tpu.memory_space<vmem>>, vector<1x4x128xf32>,
    %47 = vector.extract_strided_slice %26 {offsets = [20, 128], sizes = [4, 128], strides = [1, 1]} : vector<32x256xf32> to vector<4x128xf32>
    %c2_22 = arith.constant 2 : index
    %c4_23 = arith.constant 4 : index
    %c0_24 = arith.constant 0 : index
    %48 = vector.load %arg11[%c2_22, %c4_23, %c0_24] : memref<8x8x128xf32, #tpu.memory_space<vmem>>, vector<1x4x128xf32>
    %49 = vector.shape_cast %48 : vector<1x4x128xf32> to vector<4x128xf32>
    %50 = vector.shape_cast %47 : vector<4x128xf32> to vector<1x4x128xf32>
    tpu.vector_store %arg11[%c2_22, %c4_23, %c0_24], %50 {strides = array<i32>} : memref<8x8x128xf32, #tpu.memory_space<vmem>>, vector<1x4x128xf32>,
    %51 = vector.extract_strided_slice %26 {offsets = [12, 0], sizes = [4, 128], strides = [1, 1]} : vector<32x256xf32> to vector<4x128xf32>
    %c3 = arith.constant 3 : index
    %c0_25 = arith.constant 0 : index
    %c0_26 = arith.constant 0 : index
    %52 = vector.load %arg11[%c3, %c0_25, %c0_26] : memref<8x8x128xf32, #tpu.memory_space<vmem>>, vector<1x4x128xf32>
    %53 = vector.shape_cast %52 : vector<1x4x128xf32> to vector<4x128xf32>
    %54 = vector.shape_cast %51 : vector<4x128xf32> to vector<1x4x128xf32>
    tpu.vector_store %arg11[%c3, %c0_25, %c0_26], %54 {strides = array<i32>} : memref<8x8x128xf32, #tpu.memory_space<vmem>>, vector<1x4x128xf32>,
    %55 = vector.extract_strided_slice %26 {offsets = [16, 128], sizes = [4, 128], strides = [1, 1]} : vector<32x256xf32> to vector<4x128xf32>
    %c3_27 = arith.constant 3 : index
    %c4_28 = arith.constant 4 : index
    %c0_29 = arith.constant 0 : index
    %56 = vector.load %arg11[%c3_27, %c4_28, %c0_29] : memref<8x8x128xf32, #tpu.memory_space<vmem>>, vector<1x4x128xf32>
    %57 = vector.shape_cast %56 : vector<1x4x128xf32> to vector<4x128xf32>
    %58 = vector.shape_cast %55 : vector<4x128xf32> to vector<1x4x128xf32>
    tpu.vector_store %arg11[%c3_27, %c4_28, %c0_29], %58 {strides = array<i32>} : memref<8x8x128xf32, #tpu.memory_space<vmem>>, vector<1x4x128xf32>,
    %59 = vector.extract_strided_slice %26 {offsets = [16, 0], sizes = [4, 128], strides = [1, 1]} : vector<32x256xf32> to vector<4x128xf32>
    %c4_30 = arith.constant 4 : index
    %c0_31 = arith.constant 0 : index
    %c0_32 = arith.constant 0 : index
    %60 = vector.load %arg11[%c4_30, %c0_31, %c0_32] : memref<8x8x128xf32, #tpu.memory_space<vmem>>, vector<1x4x128xf32>
    %61 = vector.shape_cast %60 : vector<1x4x128xf32> to vector<4x128xf32>
    %62 = vector.shape_cast %59 : vector<4x128xf32> to vector<1x4x128xf32>
    tpu.vector_store %arg11[%c4_30, %c0_31, %c0_32], %62 {strides = array<i32>} : memref<8x8x128xf32, #tpu.memory_space<vmem>>, vector<1x4x128xf32>,
    %63 = vector.extract_strided_slice %26 {offsets = [12, 128], sizes = [4, 128], strides = [1, 1]} : vector<32x256xf32> to vector<4x128xf32>
    %c4_33 = arith.constant 4 : index
    %c4_34 = arith.constant 4 : index
    %c0_35 = arith.constant 0 : index
    %64 = vector.load %arg11[%c4_33, %c4_34, %c0_35] : memref<8x8x128xf32, #tpu.memory_space<vmem>>, vector<1x4x128xf32>
    %65 = vector.shape_cast %64 : vector<1x4x128xf32> to vector<4x128xf32>
    %66 = vector.shape_cast %63 : vector<4x128xf32> to vector<1x4x128xf32>
    tpu.vector_store %arg11[%c4_33, %c4_34, %c0_35], %66 {strides = array<i32>} : memref<8x8x128xf32, #tpu.memory_space<vmem>>, vector<1x4x128xf32>,
    %67 = vector.extract_strided_slice %26 {offsets = [20, 0], sizes = [4, 128], strides = [1, 1]} : vector<32x256xf32> to vector<4x128xf32>
    %c5 = arith.constant 5 : index
    %c0_36 = arith.constant 0 : index
    %c0_37 = arith.constant 0 : index
    %68 = vector.load %arg11[%c5, %c0_36, %c0_37] : memref<8x8x128xf32, #tpu.memory_space<vmem>>, vector<1x4x128xf32>
    %69 = vector.shape_cast %68 : vector<1x4x128xf32> to vector<4x128xf32>
    %70 = vector.shape_cast %67 : vector<4x128xf32> to vector<1x4x128xf32>
    tpu.vector_store %arg11[%c5, %c0_36, %c0_37], %70 {strides = array<i32>} : memref<8x8x128xf32, #tpu.memory_space<vmem>>, vector<1x4x128xf32>,
    %71 = vector.extract_strided_slice %26 {offsets = [8, 128], sizes = [4, 128], strides = [1, 1]} : vector<32x256xf32> to vector<4x128xf32>
    %c5_38 = arith.constant 5 : index
    %c4_39 = arith.constant 4 : index
    %c0_40 = arith.constant 0 : index
    %72 = vector.load %arg11[%c5_38, %c4_39, %c0_40] : memref<8x8x128xf32, #tpu.memory_space<vmem>>, vector<1x4x128xf32>
    %73 = vector.shape_cast %72 : vector<1x4x128xf32> to vector<4x128xf32>
    %74 = vector.shape_cast %71 : vector<4x128xf32> to vector<1x4x128xf32>
    tpu.vector_store %arg11[%c5_38, %c4_39, %c0_40], %74 {strides = array<i32>} : memref<8x8x128xf32, #tpu.memory_space<vmem>>, vector<1x4x128xf32>,
    %75 = vector.extract_strided_slice %26 {offsets = [24, 0], sizes = [4, 128], strides = [1, 1]} : vector<32x256xf32> to vector<4x128xf32>
    %c6 = arith.constant 6 : index
    %c0_41 = arith.constant 0 : index
    %c0_42 = arith.constant 0 : index
    %76 = vector.load %arg11[%c6, %c0_41, %c0_42] : memref<8x8x128xf32, #tpu.memory_space<vmem>>, vector<1x4x128xf32>
    %77 = vector.shape_cast %76 : vector<1x4x128xf32> to vector<4x128xf32>
    %78 = vector.shape_cast %75 : vector<4x128xf32> to vector<1x4x128xf32>
    tpu.vector_store %arg11[%c6, %c0_41, %c0_42], %78 {strides = array<i32>} : memref<8x8x128xf32, #tpu.memory_space<vmem>>, vector<1x4x128xf32>,
    %79 = vector.extract_strided_slice %26 {offsets = [4, 128], sizes = [4, 128], strides = [1, 1]} : vector<32x256xf32> to vector<4x128xf32>
    %c6_43 = arith.constant 6 : index
    %c4_44 = arith.constant 4 : index
    %c0_45 = arith.constant 0 : index
    %80 = vector.load %arg11[%c6_43, %c4_44, %c0_45] : memref<8x8x128xf32, #tpu.memory_space<vmem>>, vector<1x4x128xf32>
    %81 = vector.shape_cast %80 : vector<1x4x128xf32> to vector<4x128xf32>
    %82 = vector.shape_cast %79 : vector<4x128xf32> to vector<1x4x128xf32>
    tpu.vector_store %arg11[%c6_43, %c4_44, %c0_45], %82 {strides = array<i32>} : memref<8x8x128xf32, #tpu.memory_space<vmem>>, vector<1x4x128xf32>,
    %83 = vector.extract_strided_slice %26 {offsets = [28, 0], sizes = [4, 128], strides = [1, 1]} : vector<32x256xf32> to vector<4x128xf32>
    %c7 = arith.constant 7 : index
    %c0_46 = arith.constant 0 : index
    %c0_47 = arith.constant 0 : index
    %84 = vector.load %arg11[%c7, %c0_46, %c0_47] : memref<8x8x128xf32, #tpu.memory_space<vmem>>, vector<1x4x128xf32>
    %85 = vector.shape_cast %84 : vector<1x4x128xf32> to vector<4x128xf32>
    %86 = vector.shape_cast %83 : vector<4x128xf32> to vector<1x4x128xf32>
    tpu.vector_store %arg11[%c7, %c0_46, %c0_47], %86 {strides = array<i32>} : memref<8x8x128xf32, #tpu.memory_space<vmem>>, vector<1x4x128xf32>,
    %87 = vector.extract_strided_slice %26 {offsets = [0, 128], sizes = [4, 128], strides = [1, 1]} : vector<32x256xf32> to vector<4x128xf32>
    %c7_48 = arith.constant 7 : index
    %c4_49 = arith.constant 4 : index
    %c0_50 = arith.constant 0 : index
    %88 = vector.load %arg11[%c7_48, %c4_49, %c0_50] : memref<8x8x128xf32, #tpu.memory_space<vmem>>, vector<1x4x128xf32>
    %89 = vector.shape_cast %88 : vector<1x4x128xf32> to vector<4x128xf32>
    %90 = vector.shape_cast %87 : vector<4x128xf32> to vector<1x4x128xf32>
    tpu.vector_store %arg11[%c7_48, %c4_49, %c0_50], %90 {strides = array<i32>} : memref<8x8x128xf32, #tpu.memory_space<vmem>>, vector<1x4x128xf32>,
    %cst_51 = arith.constant 0.000000e+00 : f32
    %91 = vector.broadcast %cst_51 : f32 to vector<8x64xf32>
    %cst_52 = arith.constant 0.000000e+00 : f32
    %92 = vector.broadcast %cst_52 : f32 to vector<8x32xf32>
    %c0_53 = arith.constant 0 : index
    %c0_54 = arith.constant 0 : index
    %c0_55 = arith.constant 0 : index
    %93 = vector.load %arg11[%c0_53, %c0_54, %c0_55] : memref<8x8x128xf32, #tpu.memory_space<vmem>>, vector<1x8x128xf32>
    %94 = vector.shape_cast %93 : vector<1x8x128xf32> to vector<8x128xf32>
    %cst_56 = arith.constant dense<0.000000e+00> : vector<8x128xf32>
    %95 = tpu.matmul %91, %17, %cst_56 {dimension_numbers = #tpu.dot_dimension_numbers<[1], [0], [0], [1], [0, 0, 1, 1], [], []>} : vector<8x64xf32>, vector<64x128xf32>, vector<8x128xf32> -> vector<8x128xf32>
    %96 = arith.addf %94, %95 : vector<8x128xf32>
    %97 = math.tanh %96 : vector<8x128xf32>
    %cst_57 = arith.constant 5.000000e-01 : f32
    %98 = vector.broadcast %cst_57 : f32 to vector<8x128xf32>
    %99 = arith.mulf %98, %97 : vector<8x128xf32>
    %cst_58 = arith.constant 5.000000e-01 : f32
    %100 = vector.broadcast %cst_58 : f32 to vector<8x128xf32>
    %101 = arith.addf %99, %100 : vector<8x128xf32>
    %102 = vector.shape_cast %5 : vector<1x128xi1> to vector<1x128xi1>
    %103 = vector.broadcast %102 : vector<1x128xi1> to vector<8x128xi1>
    %104 = arith.select %103, %101, %97 : vector<8x128xi1>, vector<8x128xf32>
    %105 = vector.extract_strided_slice %104 {offsets = [0, 0], sizes = [8, 32], strides = [1, 1]} : vector<8x128xf32> to vector<8x32xf32>
    %106 = vector.extract_strided_slice %104 {offsets = [0, 32], sizes = [8, 32], strides = [1, 1]} : vector<8x128xf32> to vector<8x32xf32>
    %107 = vector.extract_strided_slice %104 {offsets = [0, 64], sizes = [8, 32], strides = [1, 1]} : vector<8x128xf32> to vector<8x32xf32>
    %108 = vector.extract_strided_slice %104 {offsets = [0, 96], sizes = [8, 32], strides = [1, 1]} : vector<8x128xf32> to vector<8x32xf32>
    %109 = arith.mulf %106, %92 : vector<8x32xf32>
    %110 = arith.mulf %105, %107 : vector<8x32xf32>
    %111 = arith.addf %109, %110 : vector<8x32xf32>
    %112 = math.tanh %111 : vector<8x32xf32>
    %113 = arith.mulf %108, %112 : vector<8x32xf32>
    %114 = tpu.concatenate %113, %113 in 1 : vector<8x32xf32>, vector<8x32xf32> -> vector<8x64xf32>
    %115 = arith.mulf %114, %16 : vector<8x64xf32>
    %116 = vector.extract_strided_slice %113 {offsets = [0, 0], sizes = [4, 32], strides = [1, 1]} : vector<8x32xf32> to vector<4x32xf32>
    %c0_59 = arith.constant 0 : index
    %c0_60 = arith.constant 0 : index
    %117 = vector.load %arg13[%c0_59, %c0_60] : memref<32x64xf32, #tpu.memory_space<vmem>>, vector<4x32xf32>
    tpu.vector_store %arg13[%c0_59, %c0_60], %116 {strides = array<i32>} : memref<32x64xf32, #tpu.memory_space<vmem>>, vector<4x32xf32>,
    %118 = vector.extract_strided_slice %113 {offsets = [4, 0], sizes = [4, 32], strides = [1, 1]} : vector<8x32xf32> to vector<4x32xf32>
    %c28 = arith.constant 28 : index
    %c32 = arith.constant 32 : index
    %119 = vector.load %arg13[%c28, %c32] : memref<32x64xf32, #tpu.memory_space<vmem>>, vector<4x32xf32>
    tpu.vector_store %arg13[%c28, %c32], %118 {strides = array<i32>} : memref<32x64xf32, #tpu.memory_space<vmem>>, vector<4x32xf32>,
    %c1_61 = arith.constant 1 : index
    %c0_62 = arith.constant 0 : index
    %c0_63 = arith.constant 0 : index
    %120 = vector.load %arg11[%c1_61, %c0_62, %c0_63] : memref<8x8x128xf32, #tpu.memory_space<vmem>>, vector<1x8x128xf32>
    %121 = vector.shape_cast %120 : vector<1x8x128xf32> to vector<8x128xf32>
    %cst_64 = arith.constant dense<0.000000e+00> : vector<8x128xf32>
    %122 = tpu.matmul %115, %17, %cst_64 {dimension_numbers = #tpu.dot_dimension_numbers<[1], [0], [0], [1], [0, 0, 1, 1], [], []>} : vector<8x64xf32>, vector<64x128xf32>, vector<8x128xf32> -> vector<8x128xf32>
    %123 = arith.addf %121, %122 : vector<8x128xf32>
    %124 = math.tanh %123 : vector<8x128xf32>
    %cst_65 = arith.constant 5.000000e-01 : f32
    %125 = vector.broadcast %cst_65 : f32 to vector<8x128xf32>
    %126 = arith.mulf %125, %124 : vector<8x128xf32>
    %cst_66 = arith.constant 5.000000e-01 : f32
    %127 = vector.broadcast %cst_66 : f32 to vector<8x128xf32>
    %128 = arith.addf %126, %127 : vector<8x128xf32>
    %129 = vector.shape_cast %5 : vector<1x128xi1> to vector<1x128xi1>
    %130 = vector.broadcast %129 : vector<1x128xi1> to vector<8x128xi1>
    %131 = arith.select %130, %128, %124 : vector<8x128xi1>, vector<8x128xf32>
    %132 = vector.extract_strided_slice %131 {offsets = [0, 0], sizes = [8, 32], strides = [1, 1]} : vector<8x128xf32> to vector<8x32xf32>
    %133 = vector.extract_strided_slice %131 {offsets = [0, 32], sizes = [8, 32], strides = [1, 1]} : vector<8x128xf32> to vector<8x32xf32>
    %134 = vector.extract_strided_slice %131 {offsets = [0, 64], sizes = [8, 32], strides = [1, 1]} : vector<8x128xf32> to vector<8x32xf32>
    %135 = vector.extract_strided_slice %131 {offsets = [0, 96], sizes = [8, 32], strides = [1, 1]} : vector<8x128xf32> to vector<8x32xf32>
    %136 = arith.mulf %133, %111 : vector<8x32xf32>
    %137 = arith.mulf %132, %134 : vector<8x32xf32>
    %138 = arith.addf %136, %137 : vector<8x32xf32>
    %139 = math.tanh %138 : vector<8x32xf32>
    %140 = arith.mulf %135, %139 : vector<8x32xf32>
    %141 = tpu.concatenate %140, %140 in 1 : vector<8x32xf32>, vector<8x32xf32> -> vector<8x64xf32>
    %142 = arith.mulf %141, %16 : vector<8x64xf32>
    %143 = vector.extract_strided_slice %140 {offsets = [0, 0], sizes = [4, 32], strides = [1, 1]} : vector<8x32xf32> to vector<4x32xf32>
    %c4_67 = arith.constant 4 : index
    %c0_68 = arith.constant 0 : index
    %144 = vector.load %arg13[%c4_67, %c0_68] : memref<32x64xf32, #tpu.memory_space<vmem>>, vector<4x32xf32>
    tpu.vector_store %arg13[%c4_67, %c0_68], %143 {strides = array<i32>} : memref<32x64xf32, #tpu.memory_space<vmem>>, vector<4x32xf32>,
    %145 = vector.extract_strided_slice %140 {offsets = [4, 0], sizes = [4, 32], strides = [1, 1]} : vector<8x32xf32> to vector<4x32xf32>
    %c24 = arith.constant 24 : index
    %c32_69 = arith.constant 32 : index
    %146 = vector.load %arg13[%c24, %c32_69] : memref<32x64xf32, #tpu.memory_space<vmem>>, vector<4x32xf32>
    tpu.vector_store %arg13[%c24, %c32_69], %145 {strides = array<i32>} : memref<32x64xf32, #tpu.memory_space<vmem>>, vector<4x32xf32>,
    %c2_70 = arith.constant 2 : index
    %c0_71 = arith.constant 0 : index
    %c0_72 = arith.constant 0 : index
    %147 = vector.load %arg11[%c2_70, %c0_71, %c0_72] : memref<8x8x128xf32, #tpu.memory_space<vmem>>, vector<1x8x128xf32>
    %148 = vector.shape_cast %147 : vector<1x8x128xf32> to vector<8x128xf32>
    %cst_73 = arith.constant dense<0.000000e+00> : vector<8x128xf32>
    %149 = tpu.matmul %142, %17, %cst_73 {dimension_numbers = #tpu.dot_dimension_numbers<[1], [0], [0], [1], [0, 0, 1, 1], [], []>} : vector<8x64xf32>, vector<64x128xf32>, vector<8x128xf32> -> vector<8x128xf32>
    %150 = arith.addf %148, %149 : vector<8x128xf32>
    %151 = math.tanh %150 : vector<8x128xf32>
    %cst_74 = arith.constant 5.000000e-01 : f32
    %152 = vector.broadcast %cst_74 : f32 to vector<8x128xf32>
    %153 = arith.mulf %152, %151 : vector<8x128xf32>
    %cst_75 = arith.constant 5.000000e-01 : f32
    %154 = vector.broadcast %cst_75 : f32 to vector<8x128xf32>
    %155 = arith.addf %153, %154 : vector<8x128xf32>
    %156 = vector.shape_cast %5 : vector<1x128xi1> to vector<1x128xi1>
    %157 = vector.broadcast %156 : vector<1x128xi1> to vector<8x128xi1>
    %158 = arith.select %157, %155, %151 : vector<8x128xi1>, vector<8x128xf32>
    %159 = vector.extract_strided_slice %158 {offsets = [0, 0], sizes = [8, 32], strides = [1, 1]} : vector<8x128xf32> to vector<8x32xf32>
    %160 = vector.extract_strided_slice %158 {offsets = [0, 32], sizes = [8, 32], strides = [1, 1]} : vector<8x128xf32> to vector<8x32xf32>
    %161 = vector.extract_strided_slice %158 {offsets = [0, 64], sizes = [8, 32], strides = [1, 1]} : vector<8x128xf32> to vector<8x32xf32>
    %162 = vector.extract_strided_slice %158 {offsets = [0, 96], sizes = [8, 32], strides = [1, 1]} : vector<8x128xf32> to vector<8x32xf32>
    %163 = arith.mulf %160, %138 : vector<8x32xf32>
    %164 = arith.mulf %159, %161 : vector<8x32xf32>
    %165 = arith.addf %163, %164 : vector<8x32xf32>
    %166 = math.tanh %165 : vector<8x32xf32>
    %167 = arith.mulf %162, %166 : vector<8x32xf32>
    %168 = tpu.concatenate %167, %167 in 1 : vector<8x32xf32>, vector<8x32xf32> -> vector<8x64xf32>
    %169 = arith.mulf %168, %16 : vector<8x64xf32>
    %170 = vector.extract_strided_slice %167 {offsets = [0, 0], sizes = [4, 32], strides = [1, 1]} : vector<8x32xf32> to vector<4x32xf32>
    %c8 = arith.constant 8 : index
    %c0_76 = arith.constant 0 : index
    %171 = vector.load %arg13[%c8, %c0_76] : memref<32x64xf32, #tpu.memory_space<vmem>>, vector<4x32xf32>
    tpu.vector_store %arg13[%c8, %c0_76], %170 {strides = array<i32>} : memref<32x64xf32, #tpu.memory_space<vmem>>, vector<4x32xf32>,
    %172 = vector.extract_strided_slice %167 {offsets = [4, 0], sizes = [4, 32], strides = [1, 1]} : vector<8x32xf32> to vector<4x32xf32>
    %c20 = arith.constant 20 : index
    %c32_77 = arith.constant 32 : index
    %173 = vector.load %arg13[%c20, %c32_77] : memref<32x64xf32, #tpu.memory_space<vmem>>, vector<4x32xf32>
    tpu.vector_store %arg13[%c20, %c32_77], %172 {strides = array<i32>} : memref<32x64xf32, #tpu.memory_space<vmem>>, vector<4x32xf32>,
    %c3_78 = arith.constant 3 : index
    %c0_79 = arith.constant 0 : index
    %c0_80 = arith.constant 0 : index
    %174 = vector.load %arg11[%c3_78, %c0_79, %c0_80] : memref<8x8x128xf32, #tpu.memory_space<vmem>>, vector<1x8x128xf32>
    %175 = vector.shape_cast %174 : vector<1x8x128xf32> to vector<8x128xf32>
    %cst_81 = arith.constant dense<0.000000e+00> : vector<8x128xf32>
    %176 = tpu.matmul %169, %17, %cst_81 {dimension_numbers = #tpu.dot_dimension_numbers<[1], [0], [0], [1], [0, 0, 1, 1], [], []>} : vector<8x64xf32>, vector<64x128xf32>, vector<8x128xf32> -> vector<8x128xf32>
    %177 = arith.addf %175, %176 : vector<8x128xf32>
    %178 = math.tanh %177 : vector<8x128xf32>
    %cst_82 = arith.constant 5.000000e-01 : f32
    %179 = vector.broadcast %cst_82 : f32 to vector<8x128xf32>
    %180 = arith.mulf %179, %178 : vector<8x128xf32>
    %cst_83 = arith.constant 5.000000e-01 : f32
    %181 = vector.broadcast %cst_83 : f32 to vector<8x128xf32>
    %182 = arith.addf %180, %181 : vector<8x128xf32>
    %183 = vector.shape_cast %5 : vector<1x128xi1> to vector<1x128xi1>
    %184 = vector.broadcast %183 : vector<1x128xi1> to vector<8x128xi1>
    %185 = arith.select %184, %182, %178 : vector<8x128xi1>, vector<8x128xf32>
    %186 = vector.extract_strided_slice %185 {offsets = [0, 0], sizes = [8, 32], strides = [1, 1]} : vector<8x128xf32> to vector<8x32xf32>
    %187 = vector.extract_strided_slice %185 {offsets = [0, 32], sizes = [8, 32], strides = [1, 1]} : vector<8x128xf32> to vector<8x32xf32>
    %188 = vector.extract_strided_slice %185 {offsets = [0, 64], sizes = [8, 32], strides = [1, 1]} : vector<8x128xf32> to vector<8x32xf32>
    %189 = vector.extract_strided_slice %185 {offsets = [0, 96], sizes = [8, 32], strides = [1, 1]} : vector<8x128xf32> to vector<8x32xf32>
    %190 = arith.mulf %187, %165 : vector<8x32xf32>
    %191 = arith.mulf %186, %188 : vector<8x32xf32>
    %192 = arith.addf %190, %191 : vector<8x32xf32>
    %193 = math.tanh %192 : vector<8x32xf32>
    %194 = arith.mulf %189, %193 : vector<8x32xf32>
    %195 = tpu.concatenate %194, %194 in 1 : vector<8x32xf32>, vector<8x32xf32> -> vector<8x64xf32>
    %196 = arith.mulf %195, %16 : vector<8x64xf32>
    %197 = vector.extract_strided_slice %194 {offsets = [0, 0], sizes = [4, 32], strides = [1, 1]} : vector<8x32xf32> to vector<4x32xf32>
    %c12 = arith.constant 12 : index
    %c0_84 = arith.constant 0 : index
    %198 = vector.load %arg13[%c12, %c0_84] : memref<32x64xf32, #tpu.memory_space<vmem>>, vector<4x32xf32>
    tpu.vector_store %arg13[%c12, %c0_84], %197 {strides = array<i32>} : memref<32x64xf32, #tpu.memory_space<vmem>>, vector<4x32xf32>,
    %199 = vector.extract_strided_slice %194 {offsets = [4, 0], sizes = [4, 32], strides = [1, 1]} : vector<8x32xf32> to vector<4x32xf32>
    %c16 = arith.constant 16 : index
    %c32_85 = arith.constant 32 : index
    %200 = vector.load %arg13[%c16, %c32_85] : memref<32x64xf32, #tpu.memory_space<vmem>>, vector<4x32xf32>
    tpu.vector_store %arg13[%c16, %c32_85], %199 {strides = array<i32>} : memref<32x64xf32, #tpu.memory_space<vmem>>, vector<4x32xf32>,
    %c4_86 = arith.constant 4 : index
    %c0_87 = arith.constant 0 : index
    %c0_88 = arith.constant 0 : index
    %201 = vector.load %arg11[%c4_86, %c0_87, %c0_88] : memref<8x8x128xf32, #tpu.memory_space<vmem>>, vector<1x8x128xf32>
    %202 = vector.shape_cast %201 : vector<1x8x128xf32> to vector<8x128xf32>
    %cst_89 = arith.constant dense<0.000000e+00> : vector<8x128xf32>
    %203 = tpu.matmul %196, %17, %cst_89 {dimension_numbers = #tpu.dot_dimension_numbers<[1], [0], [0], [1], [0, 0, 1, 1], [], []>} : vector<8x64xf32>, vector<64x128xf32>, vector<8x128xf32> -> vector<8x128xf32>
    %204 = arith.addf %202, %203 : vector<8x128xf32>
    %205 = math.tanh %204 : vector<8x128xf32>
    %cst_90 = arith.constant 5.000000e-01 : f32
    %206 = vector.broadcast %cst_90 : f32 to vector<8x128xf32>
    %207 = arith.mulf %206, %205 : vector<8x128xf32>
    %cst_91 = arith.constant 5.000000e-01 : f32
    %208 = vector.broadcast %cst_91 : f32 to vector<8x128xf32>
    %209 = arith.addf %207, %208 : vector<8x128xf32>
    %210 = vector.shape_cast %5 : vector<1x128xi1> to vector<1x128xi1>
    %211 = vector.broadcast %210 : vector<1x128xi1> to vector<8x128xi1>
    %212 = arith.select %211, %209, %205 : vector<8x128xi1>, vector<8x128xf32>
    %213 = vector.extract_strided_slice %212 {offsets = [0, 0], sizes = [8, 32], strides = [1, 1]} : vector<8x128xf32> to vector<8x32xf32>
    %214 = vector.extract_strided_slice %212 {offsets = [0, 32], sizes = [8, 32], strides = [1, 1]} : vector<8x128xf32> to vector<8x32xf32>
    %215 = vector.extract_strided_slice %212 {offsets = [0, 64], sizes = [8, 32], strides = [1, 1]} : vector<8x128xf32> to vector<8x32xf32>
    %216 = vector.extract_strided_slice %212 {offsets = [0, 96], sizes = [8, 32], strides = [1, 1]} : vector<8x128xf32> to vector<8x32xf32>
    %217 = arith.mulf %214, %192 : vector<8x32xf32>
    %218 = arith.mulf %213, %215 : vector<8x32xf32>
    %219 = arith.addf %217, %218 : vector<8x32xf32>
    %220 = math.tanh %219 : vector<8x32xf32>
    %221 = arith.mulf %216, %220 : vector<8x32xf32>
    %222 = tpu.concatenate %221, %221 in 1 : vector<8x32xf32>, vector<8x32xf32> -> vector<8x64xf32>
    %223 = arith.mulf %222, %16 : vector<8x64xf32>
    %224 = vector.extract_strided_slice %221 {offsets = [0, 0], sizes = [4, 32], strides = [1, 1]} : vector<8x32xf32> to vector<4x32xf32>
    %c16_92 = arith.constant 16 : index
    %c0_93 = arith.constant 0 : index
    %225 = vector.load %arg13[%c16_92, %c0_93] : memref<32x64xf32, #tpu.memory_space<vmem>>, vector<4x32xf32>
    tpu.vector_store %arg13[%c16_92, %c0_93], %224 {strides = array<i32>} : memref<32x64xf32, #tpu.memory_space<vmem>>, vector<4x32xf32>,
    %226 = vector.extract_strided_slice %221 {offsets = [4, 0], sizes = [4, 32], strides = [1, 1]} : vector<8x32xf32> to vector<4x32xf32>
    %c12_94 = arith.constant 12 : index
    %c32_95 = arith.constant 32 : index
    %227 = vector.load %arg13[%c12_94, %c32_95] : memref<32x64xf32, #tpu.memory_space<vmem>>, vector<4x32xf32>
    tpu.vector_store %arg13[%c12_94, %c32_95], %226 {strides = array<i32>} : memref<32x64xf32, #tpu.memory_space<vmem>>, vector<4x32xf32>,
    %c5_96 = arith.constant 5 : index
    %c0_97 = arith.constant 0 : index
    %c0_98 = arith.constant 0 : index
    %228 = vector.load %arg11[%c5_96, %c0_97, %c0_98] : memref<8x8x128xf32, #tpu.memory_space<vmem>>, vector<1x8x128xf32>
    %229 = vector.shape_cast %228 : vector<1x8x128xf32> to vector<8x128xf32>
    %cst_99 = arith.constant dense<0.000000e+00> : vector<8x128xf32>
    %230 = tpu.matmul %223, %17, %cst_99 {dimension_numbers = #tpu.dot_dimension_numbers<[1], [0], [0], [1], [0, 0, 1, 1], [], []>} : vector<8x64xf32>, vector<64x128xf32>, vector<8x128xf32> -> vector<8x128xf32>
    %231 = arith.addf %229, %230 : vector<8x128xf32>
    %232 = math.tanh %231 : vector<8x128xf32>
    %cst_100 = arith.constant 5.000000e-01 : f32
    %233 = vector.broadcast %cst_100 : f32 to vector<8x128xf32>
    %234 = arith.mulf %233, %232 : vector<8x128xf32>
    %cst_101 = arith.constant 5.000000e-01 : f32
    %235 = vector.broadcast %cst_101 : f32 to vector<8x128xf32>
    %236 = arith.addf %234, %235 : vector<8x128xf32>
    %237 = vector.shape_cast %5 : vector<1x128xi1> to vector<1x128xi1>
    %238 = vector.broadcast %237 : vector<1x128xi1> to vector<8x128xi1>
    %239 = arith.select %238, %236, %232 : vector<8x128xi1>, vector<8x128xf32>
    %240 = vector.extract_strided_slice %239 {offsets = [0, 0], sizes = [8, 32], strides = [1, 1]} : vector<8x128xf32> to vector<8x32xf32>
    %241 = vector.extract_strided_slice %239 {offsets = [0, 32], sizes = [8, 32], strides = [1, 1]} : vector<8x128xf32> to vector<8x32xf32>
    %242 = vector.extract_strided_slice %239 {offsets = [0, 64], sizes = [8, 32], strides = [1, 1]} : vector<8x128xf32> to vector<8x32xf32>
    %243 = vector.extract_strided_slice %239 {offsets = [0, 96], sizes = [8, 32], strides = [1, 1]} : vector<8x128xf32> to vector<8x32xf32>
    %244 = arith.mulf %241, %219 : vector<8x32xf32>
    %245 = arith.mulf %240, %242 : vector<8x32xf32>
    %246 = arith.addf %244, %245 : vector<8x32xf32>
    %247 = math.tanh %246 : vector<8x32xf32>
    %248 = arith.mulf %243, %247 : vector<8x32xf32>
    %249 = tpu.concatenate %248, %248 in 1 : vector<8x32xf32>, vector<8x32xf32> -> vector<8x64xf32>
    %250 = arith.mulf %249, %16 : vector<8x64xf32>
    %251 = vector.extract_strided_slice %248 {offsets = [0, 0], sizes = [4, 32], strides = [1, 1]} : vector<8x32xf32> to vector<4x32xf32>
    %c20_102 = arith.constant 20 : index
    %c0_103 = arith.constant 0 : index
    %252 = vector.load %arg13[%c20_102, %c0_103] : memref<32x64xf32, #tpu.memory_space<vmem>>, vector<4x32xf32>
    tpu.vector_store %arg13[%c20_102, %c0_103], %251 {strides = array<i32>} : memref<32x64xf32, #tpu.memory_space<vmem>>, vector<4x32xf32>,
    %253 = vector.extract_strided_slice %248 {offsets = [4, 0], sizes = [4, 32], strides = [1, 1]} : vector<8x32xf32> to vector<4x32xf32>
    %c8_104 = arith.constant 8 : index
    %c32_105 = arith.constant 32 : index
    %254 = vector.load %arg13[%c8_104, %c32_105] : memref<32x64xf32, #tpu.memory_space<vmem>>, vector<4x32xf32>
    tpu.vector_store %arg13[%c8_104, %c32_105], %253 {strides = array<i32>} : memref<32x64xf32, #tpu.memory_space<vmem>>, vector<4x32xf32>,
    %c6_106 = arith.constant 6 : index
    %c0_107 = arith.constant 0 : index
    %c0_108 = arith.constant 0 : index
    %255 = vector.load %arg11[%c6_106, %c0_107, %c0_108] : memref<8x8x128xf32, #tpu.memory_space<vmem>>, vector<1x8x128xf32>
    %256 = vector.shape_cast %255 : vector<1x8x128xf32> to vector<8x128xf32>
    %cst_109 = arith.constant dense<0.000000e+00> : vector<8x128xf32>
    %257 = tpu.matmul %250, %17, %cst_109 {dimension_numbers = #tpu.dot_dimension_numbers<[1], [0], [0], [1], [0, 0, 1, 1], [], []>} : vector<8x64xf32>, vector<64x128xf32>, vector<8x128xf32> -> vector<8x128xf32>
    %258 = arith.addf %256, %257 : vector<8x128xf32>
    %259 = math.tanh %258 : vector<8x128xf32>
    %cst_110 = arith.constant 5.000000e-01 : f32
    %260 = vector.broadcast %cst_110 : f32 to vector<8x128xf32>
    %261 = arith.mulf %260, %259 : vector<8x128xf32>
    %cst_111 = arith.constant 5.000000e-01 : f32
    %262 = vector.broadcast %cst_111 : f32 to vector<8x128xf32>
    %263 = arith.addf %261, %262 : vector<8x128xf32>
    %264 = vector.shape_cast %5 : vector<1x128xi1> to vector<1x128xi1>
    %265 = vector.broadcast %264 : vector<1x128xi1> to vector<8x128xi1>
    %266 = arith.select %265, %263, %259 : vector<8x128xi1>, vector<8x128xf32>
    %267 = vector.extract_strided_slice %266 {offsets = [0, 0], sizes = [8, 32], strides = [1, 1]} : vector<8x128xf32> to vector<8x32xf32>
    %268 = vector.extract_strided_slice %266 {offsets = [0, 32], sizes = [8, 32], strides = [1, 1]} : vector<8x128xf32> to vector<8x32xf32>
    %269 = vector.extract_strided_slice %266 {offsets = [0, 64], sizes = [8, 32], strides = [1, 1]} : vector<8x128xf32> to vector<8x32xf32>
    %270 = vector.extract_strided_slice %266 {offsets = [0, 96], sizes = [8, 32], strides = [1, 1]} : vector<8x128xf32> to vector<8x32xf32>
    %271 = arith.mulf %268, %246 : vector<8x32xf32>
    %272 = arith.mulf %267, %269 : vector<8x32xf32>
    %273 = arith.addf %271, %272 : vector<8x32xf32>
    %274 = math.tanh %273 : vector<8x32xf32>
    %275 = arith.mulf %270, %274 : vector<8x32xf32>
    %276 = tpu.concatenate %275, %275 in 1 : vector<8x32xf32>, vector<8x32xf32> -> vector<8x64xf32>
    %277 = arith.mulf %276, %16 : vector<8x64xf32>
    %278 = vector.extract_strided_slice %275 {offsets = [0, 0], sizes = [4, 32], strides = [1, 1]} : vector<8x32xf32> to vector<4x32xf32>
    %c24_112 = arith.constant 24 : index
    %c0_113 = arith.constant 0 : index
    %279 = vector.load %arg13[%c24_112, %c0_113] : memref<32x64xf32, #tpu.memory_space<vmem>>, vector<4x32xf32>
    tpu.vector_store %arg13[%c24_112, %c0_113], %278 {strides = array<i32>} : memref<32x64xf32, #tpu.memory_space<vmem>>, vector<4x32xf32>,
    %280 = vector.extract_strided_slice %275 {offsets = [4, 0], sizes = [4, 32], strides = [1, 1]} : vector<8x32xf32> to vector<4x32xf32>
    %c4_114 = arith.constant 4 : index
    %c32_115 = arith.constant 32 : index
    %281 = vector.load %arg13[%c4_114, %c32_115] : memref<32x64xf32, #tpu.memory_space<vmem>>, vector<4x32xf32>
    tpu.vector_store %arg13[%c4_114, %c32_115], %280 {strides = array<i32>} : memref<32x64xf32, #tpu.memory_space<vmem>>, vector<4x32xf32>,
    %c7_116 = arith.constant 7 : index
    %c0_117 = arith.constant 0 : index
    %c0_118 = arith.constant 0 : index
    %282 = vector.load %arg11[%c7_116, %c0_117, %c0_118] : memref<8x8x128xf32, #tpu.memory_space<vmem>>, vector<1x8x128xf32>
    %283 = vector.shape_cast %282 : vector<1x8x128xf32> to vector<8x128xf32>
    %cst_119 = arith.constant dense<0.000000e+00> : vector<8x128xf32>
    %284 = tpu.matmul %277, %17, %cst_119 {dimension_numbers = #tpu.dot_dimension_numbers<[1], [0], [0], [1], [0, 0, 1, 1], [], []>} : vector<8x64xf32>, vector<64x128xf32>, vector<8x128xf32> -> vector<8x128xf32>
    %285 = arith.addf %283, %284 : vector<8x128xf32>
    %286 = math.tanh %285 : vector<8x128xf32>
    %cst_120 = arith.constant 5.000000e-01 : f32
    %287 = vector.broadcast %cst_120 : f32 to vector<8x128xf32>
    %288 = arith.mulf %287, %286 : vector<8x128xf32>
    %cst_121 = arith.constant 5.000000e-01 : f32
    %289 = vector.broadcast %cst_121 : f32 to vector<8x128xf32>
    %290 = arith.addf %288, %289 : vector<8x128xf32>
    %291 = vector.shape_cast %5 : vector<1x128xi1> to vector<1x128xi1>
    %292 = vector.broadcast %291 : vector<1x128xi1> to vector<8x128xi1>
    %293 = arith.select %292, %290, %286 : vector<8x128xi1>, vector<8x128xf32>
    %294 = vector.extract_strided_slice %293 {offsets = [0, 0], sizes = [8, 32], strides = [1, 1]} : vector<8x128xf32> to vector<8x32xf32>
    %295 = vector.extract_strided_slice %293 {offsets = [0, 32], sizes = [8, 32], strides = [1, 1]} : vector<8x128xf32> to vector<8x32xf32>
    %296 = vector.extract_strided_slice %293 {offsets = [0, 64], sizes = [8, 32], strides = [1, 1]} : vector<8x128xf32> to vector<8x32xf32>
    %297 = vector.extract_strided_slice %293 {offsets = [0, 96], sizes = [8, 32], strides = [1, 1]} : vector<8x128xf32> to vector<8x32xf32>
    %298 = arith.mulf %295, %273 : vector<8x32xf32>
    %299 = arith.mulf %294, %296 : vector<8x32xf32>
    %300 = arith.addf %298, %299 : vector<8x32xf32>
    %301 = math.tanh %300 : vector<8x32xf32>
    %302 = arith.mulf %297, %301 : vector<8x32xf32>
    %303 = vector.extract_strided_slice %302 {offsets = [0, 0], sizes = [4, 32], strides = [1, 1]} : vector<8x32xf32> to vector<4x32xf32>
    %c28_122 = arith.constant 28 : index
    %c0_123 = arith.constant 0 : index
    %304 = vector.load %arg13[%c28_122, %c0_123] : memref<32x64xf32, #tpu.memory_space<vmem>>, vector<4x32xf32>
    tpu.vector_store %arg13[%c28_122, %c0_123], %303 {strides = array<i32>} : memref<32x64xf32, #tpu.memory_space<vmem>>, vector<4x32xf32>,
    %305 = vector.extract_strided_slice %302 {offsets = [4, 0], sizes = [4, 32], strides = [1, 1]} : vector<8x32xf32> to vector<4x32xf32>
    %c0_124 = arith.constant 0 : index
    %c32_125 = arith.constant 32 : index
    %306 = vector.load %arg13[%c0_124, %c32_125] : memref<32x64xf32, #tpu.memory_space<vmem>>, vector<4x32xf32>
    tpu.vector_store %arg13[%c0_124, %c32_125], %305 {strides = array<i32>} : memref<32x64xf32, #tpu.memory_space<vmem>>, vector<4x32xf32>,
    %c0_126 = arith.constant 0 : index
    %c0_127 = arith.constant 0 : index
    %307 = vector.load %arg13[%c0_126, %c0_127] : memref<32x64xf32, #tpu.memory_space<vmem>>, vector<32x64xf32>
    %c0_128 = arith.constant 0 : index
    %c0_129 = arith.constant 0 : index
    %308 = vector.load %arg3[%c0_128, %c0_129] : memref<64x256xf32, #tpu.memory_space<vmem>>, vector<64x256xf32>
    %cst_130 = arith.constant dense<0.000000e+00> : vector<32x256xf32>
    %309 = tpu.matmul %307, %308, %cst_130 {dimension_numbers = #tpu.dot_dimension_numbers<[1], [0], [0], [1], [0, 0, 1, 1], [], []>} : vector<32x64xf32>, vector<64x256xf32>, vector<32x256xf32> -> vector<32x256xf32>
    %c0_131 = arith.constant 0 : index
    %c0_132 = arith.constant 0 : index
    %310 = vector.load %arg4[%c0_131, %c0_132] : memref<1x256xf32, #tpu.memory_space<vmem>>, vector<1x256xf32>
    %311 = vector.broadcast %310 : vector<1x256xf32> to vector<32x256xf32>
    %312 = arith.addf %309, %311 : vector<32x256xf32>
    %313 = vector.extract_strided_slice %312 {offsets = [0, 0], sizes = [4, 128], strides = [1, 1]} : vector<32x256xf32> to vector<4x128xf32>
    %c0_133 = arith.constant 0 : index
    %c0_134 = arith.constant 0 : index
    %c0_135 = arith.constant 0 : index
    %314 = vector.load %arg12[%c0_133, %c0_134, %c0_135] : memref<8x8x128xf32, #tpu.memory_space<vmem>>, vector<1x4x128xf32>
    %315 = vector.shape_cast %314 : vector<1x4x128xf32> to vector<4x128xf32>
    %316 = vector.shape_cast %313 : vector<4x128xf32> to vector<1x4x128xf32>
    tpu.vector_store %arg12[%c0_133, %c0_134, %c0_135], %316 {strides = array<i32>} : memref<8x8x128xf32, #tpu.memory_space<vmem>>, vector<1x4x128xf32>,
    %317 = vector.extract_strided_slice %312 {offsets = [28, 128], sizes = [4, 128], strides = [1, 1]} : vector<32x256xf32> to vector<4x128xf32>
    %c0_136 = arith.constant 0 : index
    %c4_137 = arith.constant 4 : index
    %c0_138 = arith.constant 0 : index
    %318 = vector.load %arg12[%c0_136, %c4_137, %c0_138] : memref<8x8x128xf32, #tpu.memory_space<vmem>>, vector<1x4x128xf32>
    %319 = vector.shape_cast %318 : vector<1x4x128xf32> to vector<4x128xf32>
    %320 = vector.shape_cast %317 : vector<4x128xf32> to vector<1x4x128xf32>
    tpu.vector_store %arg12[%c0_136, %c4_137, %c0_138], %320 {strides = array<i32>} : memref<8x8x128xf32, #tpu.memory_space<vmem>>, vector<1x4x128xf32>,
    %321 = vector.extract_strided_slice %312 {offsets = [4, 0], sizes = [4, 128], strides = [1, 1]} : vector<32x256xf32> to vector<4x128xf32>
    %c1_139 = arith.constant 1 : index
    %c0_140 = arith.constant 0 : index
    %c0_141 = arith.constant 0 : index
    %322 = vector.load %arg12[%c1_139, %c0_140, %c0_141] : memref<8x8x128xf32, #tpu.memory_space<vmem>>, vector<1x4x128xf32>
    %323 = vector.shape_cast %322 : vector<1x4x128xf32> to vector<4x128xf32>
    %324 = vector.shape_cast %321 : vector<4x128xf32> to vector<1x4x128xf32>
    tpu.vector_store %arg12[%c1_139, %c0_140, %c0_141], %324 {strides = array<i32>} : memref<8x8x128xf32, #tpu.memory_space<vmem>>, vector<1x4x128xf32>,
    %325 = vector.extract_strided_slice %312 {offsets = [24, 128], sizes = [4, 128], strides = [1, 1]} : vector<32x256xf32> to vector<4x128xf32>
    %c1_142 = arith.constant 1 : index
    %c4_143 = arith.constant 4 : index
    %c0_144 = arith.constant 0 : index
    %326 = vector.load %arg12[%c1_142, %c4_143, %c0_144] : memref<8x8x128xf32, #tpu.memory_space<vmem>>, vector<1x4x128xf32>
    %327 = vector.shape_cast %326 : vector<1x4x128xf32> to vector<4x128xf32>
    %328 = vector.shape_cast %325 : vector<4x128xf32> to vector<1x4x128xf32>
    tpu.vector_store %arg12[%c1_142, %c4_143, %c0_144], %328 {strides = array<i32>} : memref<8x8x128xf32, #tpu.memory_space<vmem>>, vector<1x4x128xf32>,
    %329 = vector.extract_strided_slice %312 {offsets = [8, 0], sizes = [4, 128], strides = [1, 1]} : vector<32x256xf32> to vector<4x128xf32>
    %c2_145 = arith.constant 2 : index
    %c0_146 = arith.constant 0 : index
    %c0_147 = arith.constant 0 : index
    %330 = vector.load %arg12[%c2_145, %c0_146, %c0_147] : memref<8x8x128xf32, #tpu.memory_space<vmem>>, vector<1x4x128xf32>
    %331 = vector.shape_cast %330 : vector<1x4x128xf32> to vector<4x128xf32>
    %332 = vector.shape_cast %329 : vector<4x128xf32> to vector<1x4x128xf32>
    tpu.vector_store %arg12[%c2_145, %c0_146, %c0_147], %332 {strides = array<i32>} : memref<8x8x128xf32, #tpu.memory_space<vmem>>, vector<1x4x128xf32>,
    %333 = vector.extract_strided_slice %312 {offsets = [20, 128], sizes = [4, 128], strides = [1, 1]} : vector<32x256xf32> to vector<4x128xf32>
    %c2_148 = arith.constant 2 : index
    %c4_149 = arith.constant 4 : index
    %c0_150 = arith.constant 0 : index
    %334 = vector.load %arg12[%c2_148, %c4_149, %c0_150] : memref<8x8x128xf32, #tpu.memory_space<vmem>>, vector<1x4x128xf32>
    %335 = vector.shape_cast %334 : vector<1x4x128xf32> to vector<4x128xf32>
    %336 = vector.shape_cast %333 : vector<4x128xf32> to vector<1x4x128xf32>
    tpu.vector_store %arg12[%c2_148, %c4_149, %c0_150], %336 {strides = array<i32>} : memref<8x8x128xf32, #tpu.memory_space<vmem>>, vector<1x4x128xf32>,
    %337 = vector.extract_strided_slice %312 {offsets = [12, 0], sizes = [4, 128], strides = [1, 1]} : vector<32x256xf32> to vector<4x128xf32>
    %c3_151 = arith.constant 3 : index
    %c0_152 = arith.constant 0 : index
    %c0_153 = arith.constant 0 : index
    %338 = vector.load %arg12[%c3_151, %c0_152, %c0_153] : memref<8x8x128xf32, #tpu.memory_space<vmem>>, vector<1x4x128xf32>
    %339 = vector.shape_cast %338 : vector<1x4x128xf32> to vector<4x128xf32>
    %340 = vector.shape_cast %337 : vector<4x128xf32> to vector<1x4x128xf32>
    tpu.vector_store %arg12[%c3_151, %c0_152, %c0_153], %340 {strides = array<i32>} : memref<8x8x128xf32, #tpu.memory_space<vmem>>, vector<1x4x128xf32>,
    %341 = vector.extract_strided_slice %312 {offsets = [16, 128], sizes = [4, 128], strides = [1, 1]} : vector<32x256xf32> to vector<4x128xf32>
    %c3_154 = arith.constant 3 : index
    %c4_155 = arith.constant 4 : index
    %c0_156 = arith.constant 0 : index
    %342 = vector.load %arg12[%c3_154, %c4_155, %c0_156] : memref<8x8x128xf32, #tpu.memory_space<vmem>>, vector<1x4x128xf32>
    %343 = vector.shape_cast %342 : vector<1x4x128xf32> to vector<4x128xf32>
    %344 = vector.shape_cast %341 : vector<4x128xf32> to vector<1x4x128xf32>
    tpu.vector_store %arg12[%c3_154, %c4_155, %c0_156], %344 {strides = array<i32>} : memref<8x8x128xf32, #tpu.memory_space<vmem>>, vector<1x4x128xf32>,
    %345 = vector.extract_strided_slice %312 {offsets = [16, 0], sizes = [4, 128], strides = [1, 1]} : vector<32x256xf32> to vector<4x128xf32>
    %c4_157 = arith.constant 4 : index
    %c0_158 = arith.constant 0 : index
    %c0_159 = arith.constant 0 : index
    %346 = vector.load %arg12[%c4_157, %c0_158, %c0_159] : memref<8x8x128xf32, #tpu.memory_space<vmem>>, vector<1x4x128xf32>
    %347 = vector.shape_cast %346 : vector<1x4x128xf32> to vector<4x128xf32>
    %348 = vector.shape_cast %345 : vector<4x128xf32> to vector<1x4x128xf32>
    tpu.vector_store %arg12[%c4_157, %c0_158, %c0_159], %348 {strides = array<i32>} : memref<8x8x128xf32, #tpu.memory_space<vmem>>, vector<1x4x128xf32>,
    %349 = vector.extract_strided_slice %312 {offsets = [12, 128], sizes = [4, 128], strides = [1, 1]} : vector<32x256xf32> to vector<4x128xf32>
    %c4_160 = arith.constant 4 : index
    %c4_161 = arith.constant 4 : index
    %c0_162 = arith.constant 0 : index
    %350 = vector.load %arg12[%c4_160, %c4_161, %c0_162] : memref<8x8x128xf32, #tpu.memory_space<vmem>>, vector<1x4x128xf32>
    %351 = vector.shape_cast %350 : vector<1x4x128xf32> to vector<4x128xf32>
    %352 = vector.shape_cast %349 : vector<4x128xf32> to vector<1x4x128xf32>
    tpu.vector_store %arg12[%c4_160, %c4_161, %c0_162], %352 {strides = array<i32>} : memref<8x8x128xf32, #tpu.memory_space<vmem>>, vector<1x4x128xf32>,
    %353 = vector.extract_strided_slice %312 {offsets = [20, 0], sizes = [4, 128], strides = [1, 1]} : vector<32x256xf32> to vector<4x128xf32>
    %c5_163 = arith.constant 5 : index
    %c0_164 = arith.constant 0 : index
    %c0_165 = arith.constant 0 : index
    %354 = vector.load %arg12[%c5_163, %c0_164, %c0_165] : memref<8x8x128xf32, #tpu.memory_space<vmem>>, vector<1x4x128xf32>
    %355 = vector.shape_cast %354 : vector<1x4x128xf32> to vector<4x128xf32>
    %356 = vector.shape_cast %353 : vector<4x128xf32> to vector<1x4x128xf32>
    tpu.vector_store %arg12[%c5_163, %c0_164, %c0_165], %356 {strides = array<i32>} : memref<8x8x128xf32, #tpu.memory_space<vmem>>, vector<1x4x128xf32>,
    %357 = vector.extract_strided_slice %312 {offsets = [8, 128], sizes = [4, 128], strides = [1, 1]} : vector<32x256xf32> to vector<4x128xf32>
    %c5_166 = arith.constant 5 : index
    %c4_167 = arith.constant 4 : index
    %c0_168 = arith.constant 0 : index
    %358 = vector.load %arg12[%c5_166, %c4_167, %c0_168] : memref<8x8x128xf32, #tpu.memory_space<vmem>>, vector<1x4x128xf32>
    %359 = vector.shape_cast %358 : vector<1x4x128xf32> to vector<4x128xf32>
    %360 = vector.shape_cast %357 : vector<4x128xf32> to vector<1x4x128xf32>
    tpu.vector_store %arg12[%c5_166, %c4_167, %c0_168], %360 {strides = array<i32>} : memref<8x8x128xf32, #tpu.memory_space<vmem>>, vector<1x4x128xf32>,
    %361 = vector.extract_strided_slice %312 {offsets = [24, 0], sizes = [4, 128], strides = [1, 1]} : vector<32x256xf32> to vector<4x128xf32>
    %c6_169 = arith.constant 6 : index
    %c0_170 = arith.constant 0 : index
    %c0_171 = arith.constant 0 : index
    %362 = vector.load %arg12[%c6_169, %c0_170, %c0_171] : memref<8x8x128xf32, #tpu.memory_space<vmem>>, vector<1x4x128xf32>
    %363 = vector.shape_cast %362 : vector<1x4x128xf32> to vector<4x128xf32>
    %364 = vector.shape_cast %361 : vector<4x128xf32> to vector<1x4x128xf32>
    tpu.vector_store %arg12[%c6_169, %c0_170, %c0_171], %364 {strides = array<i32>} : memref<8x8x128xf32, #tpu.memory_space<vmem>>, vector<1x4x128xf32>,
    %365 = vector.extract_strided_slice %312 {offsets = [4, 128], sizes = [4, 128], strides = [1, 1]} : vector<32x256xf32> to vector<4x128xf32>
    %c6_172 = arith.constant 6 : index
    %c4_173 = arith.constant 4 : index
    %c0_174 = arith.constant 0 : index
    %366 = vector.load %arg12[%c6_172, %c4_173, %c0_174] : memref<8x8x128xf32, #tpu.memory_space<vmem>>, vector<1x4x128xf32>
    %367 = vector.shape_cast %366 : vector<1x4x128xf32> to vector<4x128xf32>
    %368 = vector.shape_cast %365 : vector<4x128xf32> to vector<1x4x128xf32>
    tpu.vector_store %arg12[%c6_172, %c4_173, %c0_174], %368 {strides = array<i32>} : memref<8x8x128xf32, #tpu.memory_space<vmem>>, vector<1x4x128xf32>,
    %369 = vector.extract_strided_slice %312 {offsets = [28, 0], sizes = [4, 128], strides = [1, 1]} : vector<32x256xf32> to vector<4x128xf32>
    %c7_175 = arith.constant 7 : index
    %c0_176 = arith.constant 0 : index
    %c0_177 = arith.constant 0 : index
    %370 = vector.load %arg12[%c7_175, %c0_176, %c0_177] : memref<8x8x128xf32, #tpu.memory_space<vmem>>, vector<1x4x128xf32>
    %371 = vector.shape_cast %370 : vector<1x4x128xf32> to vector<4x128xf32>
    %372 = vector.shape_cast %369 : vector<4x128xf32> to vector<1x4x128xf32>
    tpu.vector_store %arg12[%c7_175, %c0_176, %c0_177], %372 {strides = array<i32>} : memref<8x8x128xf32, #tpu.memory_space<vmem>>, vector<1x4x128xf32>,
    %373 = vector.extract_strided_slice %312 {offsets = [0, 128], sizes = [4, 128], strides = [1, 1]} : vector<32x256xf32> to vector<4x128xf32>
    %c7_178 = arith.constant 7 : index
    %c4_179 = arith.constant 4 : index
    %c0_180 = arith.constant 0 : index
    %374 = vector.load %arg12[%c7_178, %c4_179, %c0_180] : memref<8x8x128xf32, #tpu.memory_space<vmem>>, vector<1x4x128xf32>
    %375 = vector.shape_cast %374 : vector<1x4x128xf32> to vector<4x128xf32>
    %376 = vector.shape_cast %373 : vector<4x128xf32> to vector<1x4x128xf32>
    tpu.vector_store %arg12[%c7_178, %c4_179, %c0_180], %376 {strides = array<i32>} : memref<8x8x128xf32, #tpu.memory_space<vmem>>, vector<1x4x128xf32>,
    %cst_181 = arith.constant 0.000000e+00 : f32
    %377 = vector.broadcast %cst_181 : f32 to vector<8x64xf32>
    %cst_182 = arith.constant 0.000000e+00 : f32
    %378 = vector.broadcast %cst_182 : f32 to vector<8x32xf32>
    %c0_183 = arith.constant 0 : index
    %c0_184 = arith.constant 0 : index
    %c0_185 = arith.constant 0 : index
    %379 = vector.load %arg12[%c0_183, %c0_184, %c0_185] : memref<8x8x128xf32, #tpu.memory_space<vmem>>, vector<1x8x128xf32>
    %380 = vector.shape_cast %379 : vector<1x8x128xf32> to vector<8x128xf32>
    %cst_186 = arith.constant dense<0.000000e+00> : vector<8x128xf32>
    %381 = tpu.matmul %377, %18, %cst_186 {dimension_numbers = #tpu.dot_dimension_numbers<[1], [0], [0], [1], [0, 0, 1, 1], [], []>} : vector<8x64xf32>, vector<64x128xf32>, vector<8x128xf32> -> vector<8x128xf32>
    %382 = arith.addf %380, %381 : vector<8x128xf32>
    %383 = math.tanh %382 : vector<8x128xf32>
    %cst_187 = arith.constant 5.000000e-01 : f32
    %384 = vector.broadcast %cst_187 : f32 to vector<8x128xf32>
    %385 = arith.mulf %384, %383 : vector<8x128xf32>
    %cst_188 = arith.constant 5.000000e-01 : f32
    %386 = vector.broadcast %cst_188 : f32 to vector<8x128xf32>
    %387 = arith.addf %385, %386 : vector<8x128xf32>
    %388 = vector.shape_cast %5 : vector<1x128xi1> to vector<1x128xi1>
    %389 = vector.broadcast %388 : vector<1x128xi1> to vector<8x128xi1>
    %390 = arith.select %389, %387, %383 : vector<8x128xi1>, vector<8x128xf32>
    %391 = vector.extract_strided_slice %390 {offsets = [0, 0], sizes = [8, 32], strides = [1, 1]} : vector<8x128xf32> to vector<8x32xf32>
    %392 = vector.extract_strided_slice %390 {offsets = [0, 32], sizes = [8, 32], strides = [1, 1]} : vector<8x128xf32> to vector<8x32xf32>
    %393 = vector.extract_strided_slice %390 {offsets = [0, 64], sizes = [8, 32], strides = [1, 1]} : vector<8x128xf32> to vector<8x32xf32>
    %394 = vector.extract_strided_slice %390 {offsets = [0, 96], sizes = [8, 32], strides = [1, 1]} : vector<8x128xf32> to vector<8x32xf32>
    %395 = arith.mulf %392, %378 : vector<8x32xf32>
    %396 = arith.mulf %391, %393 : vector<8x32xf32>
    %397 = arith.addf %395, %396 : vector<8x32xf32>
    %398 = math.tanh %397 : vector<8x32xf32>
    %399 = arith.mulf %394, %398 : vector<8x32xf32>
    %400 = tpu.concatenate %399, %399 in 1 : vector<8x32xf32>, vector<8x32xf32> -> vector<8x64xf32>
    %401 = arith.mulf %400, %16 : vector<8x64xf32>
    %c1_189 = arith.constant 1 : index
    %c0_190 = arith.constant 0 : index
    %c0_191 = arith.constant 0 : index
    %402 = vector.load %arg12[%c1_189, %c0_190, %c0_191] : memref<8x8x128xf32, #tpu.memory_space<vmem>>, vector<1x8x128xf32>
    %403 = vector.shape_cast %402 : vector<1x8x128xf32> to vector<8x128xf32>
    %cst_192 = arith.constant dense<0.000000e+00> : vector<8x128xf32>
    %404 = tpu.matmul %401, %18, %cst_192 {dimension_numbers = #tpu.dot_dimension_numbers<[1], [0], [0], [1], [0, 0, 1, 1], [], []>} : vector<8x64xf32>, vector<64x128xf32>, vector<8x128xf32> -> vector<8x128xf32>
    %405 = arith.addf %403, %404 : vector<8x128xf32>
    %406 = math.tanh %405 : vector<8x128xf32>
    %cst_193 = arith.constant 5.000000e-01 : f32
    %407 = vector.broadcast %cst_193 : f32 to vector<8x128xf32>
    %408 = arith.mulf %407, %406 : vector<8x128xf32>
    %cst_194 = arith.constant 5.000000e-01 : f32
    %409 = vector.broadcast %cst_194 : f32 to vector<8x128xf32>
    %410 = arith.addf %408, %409 : vector<8x128xf32>
    %411 = vector.shape_cast %5 : vector<1x128xi1> to vector<1x128xi1>
    %412 = vector.broadcast %411 : vector<1x128xi1> to vector<8x128xi1>
    %413 = arith.select %412, %410, %406 : vector<8x128xi1>, vector<8x128xf32>
    %414 = vector.extract_strided_slice %413 {offsets = [0, 0], sizes = [8, 32], strides = [1, 1]} : vector<8x128xf32> to vector<8x32xf32>
    %415 = vector.extract_strided_slice %413 {offsets = [0, 32], sizes = [8, 32], strides = [1, 1]} : vector<8x128xf32> to vector<8x32xf32>
    %416 = vector.extract_strided_slice %413 {offsets = [0, 64], sizes = [8, 32], strides = [1, 1]} : vector<8x128xf32> to vector<8x32xf32>
    %417 = vector.extract_strided_slice %413 {offsets = [0, 96], sizes = [8, 32], strides = [1, 1]} : vector<8x128xf32> to vector<8x32xf32>
    %418 = arith.mulf %415, %397 : vector<8x32xf32>
    %419 = arith.mulf %414, %416 : vector<8x32xf32>
    %420 = arith.addf %418, %419 : vector<8x32xf32>
    %421 = math.tanh %420 : vector<8x32xf32>
    %422 = arith.mulf %417, %421 : vector<8x32xf32>
    %423 = tpu.concatenate %422, %422 in 1 : vector<8x32xf32>, vector<8x32xf32> -> vector<8x64xf32>
    %424 = arith.mulf %423, %16 : vector<8x64xf32>
    %c2_195 = arith.constant 2 : index
    %c0_196 = arith.constant 0 : index
    %c0_197 = arith.constant 0 : index
    %425 = vector.load %arg12[%c2_195, %c0_196, %c0_197] : memref<8x8x128xf32, #tpu.memory_space<vmem>>, vector<1x8x128xf32>
    %426 = vector.shape_cast %425 : vector<1x8x128xf32> to vector<8x128xf32>
    %cst_198 = arith.constant dense<0.000000e+00> : vector<8x128xf32>
    %427 = tpu.matmul %424, %18, %cst_198 {dimension_numbers = #tpu.dot_dimension_numbers<[1], [0], [0], [1], [0, 0, 1, 1], [], []>} : vector<8x64xf32>, vector<64x128xf32>, vector<8x128xf32> -> vector<8x128xf32>
    %428 = arith.addf %426, %427 : vector<8x128xf32>
    %429 = math.tanh %428 : vector<8x128xf32>
    %cst_199 = arith.constant 5.000000e-01 : f32
    %430 = vector.broadcast %cst_199 : f32 to vector<8x128xf32>
    %431 = arith.mulf %430, %429 : vector<8x128xf32>
    %cst_200 = arith.constant 5.000000e-01 : f32
    %432 = vector.broadcast %cst_200 : f32 to vector<8x128xf32>
    %433 = arith.addf %431, %432 : vector<8x128xf32>
    %434 = vector.shape_cast %5 : vector<1x128xi1> to vector<1x128xi1>
    %435 = vector.broadcast %434 : vector<1x128xi1> to vector<8x128xi1>
    %436 = arith.select %435, %433, %429 : vector<8x128xi1>, vector<8x128xf32>
    %437 = vector.extract_strided_slice %436 {offsets = [0, 0], sizes = [8, 32], strides = [1, 1]} : vector<8x128xf32> to vector<8x32xf32>
    %438 = vector.extract_strided_slice %436 {offsets = [0, 32], sizes = [8, 32], strides = [1, 1]} : vector<8x128xf32> to vector<8x32xf32>
    %439 = vector.extract_strided_slice %436 {offsets = [0, 64], sizes = [8, 32], strides = [1, 1]} : vector<8x128xf32> to vector<8x32xf32>
    %440 = vector.extract_strided_slice %436 {offsets = [0, 96], sizes = [8, 32], strides = [1, 1]} : vector<8x128xf32> to vector<8x32xf32>
    %441 = arith.mulf %438, %420 : vector<8x32xf32>
    %442 = arith.mulf %437, %439 : vector<8x32xf32>
    %443 = arith.addf %441, %442 : vector<8x32xf32>
    %444 = math.tanh %443 : vector<8x32xf32>
    %445 = arith.mulf %440, %444 : vector<8x32xf32>
    %446 = tpu.concatenate %445, %445 in 1 : vector<8x32xf32>, vector<8x32xf32> -> vector<8x64xf32>
    %447 = arith.mulf %446, %16 : vector<8x64xf32>
    %c3_201 = arith.constant 3 : index
    %c0_202 = arith.constant 0 : index
    %c0_203 = arith.constant 0 : index
    %448 = vector.load %arg12[%c3_201, %c0_202, %c0_203] : memref<8x8x128xf32, #tpu.memory_space<vmem>>, vector<1x8x128xf32>
    %449 = vector.shape_cast %448 : vector<1x8x128xf32> to vector<8x128xf32>
    %cst_204 = arith.constant dense<0.000000e+00> : vector<8x128xf32>
    %450 = tpu.matmul %447, %18, %cst_204 {dimension_numbers = #tpu.dot_dimension_numbers<[1], [0], [0], [1], [0, 0, 1, 1], [], []>} : vector<8x64xf32>, vector<64x128xf32>, vector<8x128xf32> -> vector<8x128xf32>
    %451 = arith.addf %449, %450 : vector<8x128xf32>
    %452 = math.tanh %451 : vector<8x128xf32>
    %cst_205 = arith.constant 5.000000e-01 : f32
    %453 = vector.broadcast %cst_205 : f32 to vector<8x128xf32>
    %454 = arith.mulf %453, %452 : vector<8x128xf32>
    %cst_206 = arith.constant 5.000000e-01 : f32
    %455 = vector.broadcast %cst_206 : f32 to vector<8x128xf32>
    %456 = arith.addf %454, %455 : vector<8x128xf32>
    %457 = vector.shape_cast %5 : vector<1x128xi1> to vector<1x128xi1>
    %458 = vector.broadcast %457 : vector<1x128xi1> to vector<8x128xi1>
    %459 = arith.select %458, %456, %452 : vector<8x128xi1>, vector<8x128xf32>
    %460 = vector.extract_strided_slice %459 {offsets = [0, 0], sizes = [8, 32], strides = [1, 1]} : vector<8x128xf32> to vector<8x32xf32>
    %461 = vector.extract_strided_slice %459 {offsets = [0, 32], sizes = [8, 32], strides = [1, 1]} : vector<8x128xf32> to vector<8x32xf32>
    %462 = vector.extract_strided_slice %459 {offsets = [0, 64], sizes = [8, 32], strides = [1, 1]} : vector<8x128xf32> to vector<8x32xf32>
    %463 = vector.extract_strided_slice %459 {offsets = [0, 96], sizes = [8, 32], strides = [1, 1]} : vector<8x128xf32> to vector<8x32xf32>
    %464 = arith.mulf %461, %443 : vector<8x32xf32>
    %465 = arith.mulf %460, %462 : vector<8x32xf32>
    %466 = arith.addf %464, %465 : vector<8x32xf32>
    %467 = math.tanh %466 : vector<8x32xf32>
    %468 = arith.mulf %463, %467 : vector<8x32xf32>
    %469 = tpu.concatenate %468, %468 in 1 : vector<8x32xf32>, vector<8x32xf32> -> vector<8x64xf32>
    %470 = arith.mulf %469, %16 : vector<8x64xf32>
    %c4_207 = arith.constant 4 : index
    %c0_208 = arith.constant 0 : index
    %c0_209 = arith.constant 0 : index
    %471 = vector.load %arg12[%c4_207, %c0_208, %c0_209] : memref<8x8x128xf32, #tpu.memory_space<vmem>>, vector<1x8x128xf32>
    %472 = vector.shape_cast %471 : vector<1x8x128xf32> to vector<8x128xf32>
    %cst_210 = arith.constant dense<0.000000e+00> : vector<8x128xf32>
    %473 = tpu.matmul %470, %18, %cst_210 {dimension_numbers = #tpu.dot_dimension_numbers<[1], [0], [0], [1], [0, 0, 1, 1], [], []>} : vector<8x64xf32>, vector<64x128xf32>, vector<8x128xf32> -> vector<8x128xf32>
    %474 = arith.addf %472, %473 : vector<8x128xf32>
    %475 = math.tanh %474 : vector<8x128xf32>
    %cst_211 = arith.constant 5.000000e-01 : f32
    %476 = vector.broadcast %cst_211 : f32 to vector<8x128xf32>
    %477 = arith.mulf %476, %475 : vector<8x128xf32>
    %cst_212 = arith.constant 5.000000e-01 : f32
    %478 = vector.broadcast %cst_212 : f32 to vector<8x128xf32>
    %479 = arith.addf %477, %478 : vector<8x128xf32>
    %480 = vector.shape_cast %5 : vector<1x128xi1> to vector<1x128xi1>
    %481 = vector.broadcast %480 : vector<1x128xi1> to vector<8x128xi1>
    %482 = arith.select %481, %479, %475 : vector<8x128xi1>, vector<8x128xf32>
    %483 = vector.extract_strided_slice %482 {offsets = [0, 0], sizes = [8, 32], strides = [1, 1]} : vector<8x128xf32> to vector<8x32xf32>
    %484 = vector.extract_strided_slice %482 {offsets = [0, 32], sizes = [8, 32], strides = [1, 1]} : vector<8x128xf32> to vector<8x32xf32>
    %485 = vector.extract_strided_slice %482 {offsets = [0, 64], sizes = [8, 32], strides = [1, 1]} : vector<8x128xf32> to vector<8x32xf32>
    %486 = vector.extract_strided_slice %482 {offsets = [0, 96], sizes = [8, 32], strides = [1, 1]} : vector<8x128xf32> to vector<8x32xf32>
    %487 = arith.mulf %484, %466 : vector<8x32xf32>
    %488 = arith.mulf %483, %485 : vector<8x32xf32>
    %489 = arith.addf %487, %488 : vector<8x32xf32>
    %490 = math.tanh %489 : vector<8x32xf32>
    %491 = arith.mulf %486, %490 : vector<8x32xf32>
    %492 = tpu.concatenate %491, %491 in 1 : vector<8x32xf32>, vector<8x32xf32> -> vector<8x64xf32>
    %493 = arith.mulf %492, %16 : vector<8x64xf32>
    %c5_213 = arith.constant 5 : index
    %c0_214 = arith.constant 0 : index
    %c0_215 = arith.constant 0 : index
    %494 = vector.load %arg12[%c5_213, %c0_214, %c0_215] : memref<8x8x128xf32, #tpu.memory_space<vmem>>, vector<1x8x128xf32>
    %495 = vector.shape_cast %494 : vector<1x8x128xf32> to vector<8x128xf32>
    %cst_216 = arith.constant dense<0.000000e+00> : vector<8x128xf32>
    %496 = tpu.matmul %493, %18, %cst_216 {dimension_numbers = #tpu.dot_dimension_numbers<[1], [0], [0], [1], [0, 0, 1, 1], [], []>} : vector<8x64xf32>, vector<64x128xf32>, vector<8x128xf32> -> vector<8x128xf32>
    %497 = arith.addf %495, %496 : vector<8x128xf32>
    %498 = math.tanh %497 : vector<8x128xf32>
    %cst_217 = arith.constant 5.000000e-01 : f32
    %499 = vector.broadcast %cst_217 : f32 to vector<8x128xf32>
    %500 = arith.mulf %499, %498 : vector<8x128xf32>
    %cst_218 = arith.constant 5.000000e-01 : f32
    %501 = vector.broadcast %cst_218 : f32 to vector<8x128xf32>
    %502 = arith.addf %500, %501 : vector<8x128xf32>
    %503 = vector.shape_cast %5 : vector<1x128xi1> to vector<1x128xi1>
    %504 = vector.broadcast %503 : vector<1x128xi1> to vector<8x128xi1>
    %505 = arith.select %504, %502, %498 : vector<8x128xi1>, vector<8x128xf32>
    %506 = vector.extract_strided_slice %505 {offsets = [0, 0], sizes = [8, 32], strides = [1, 1]} : vector<8x128xf32> to vector<8x32xf32>
    %507 = vector.extract_strided_slice %505 {offsets = [0, 32], sizes = [8, 32], strides = [1, 1]} : vector<8x128xf32> to vector<8x32xf32>
    %508 = vector.extract_strided_slice %505 {offsets = [0, 64], sizes = [8, 32], strides = [1, 1]} : vector<8x128xf32> to vector<8x32xf32>
    %509 = vector.extract_strided_slice %505 {offsets = [0, 96], sizes = [8, 32], strides = [1, 1]} : vector<8x128xf32> to vector<8x32xf32>
    %510 = arith.mulf %507, %489 : vector<8x32xf32>
    %511 = arith.mulf %506, %508 : vector<8x32xf32>
    %512 = arith.addf %510, %511 : vector<8x32xf32>
    %513 = math.tanh %512 : vector<8x32xf32>
    %514 = arith.mulf %509, %513 : vector<8x32xf32>
    %515 = tpu.concatenate %514, %514 in 1 : vector<8x32xf32>, vector<8x32xf32> -> vector<8x64xf32>
    %516 = arith.mulf %515, %16 : vector<8x64xf32>
    %c6_219 = arith.constant 6 : index
    %c0_220 = arith.constant 0 : index
    %c0_221 = arith.constant 0 : index
    %517 = vector.load %arg12[%c6_219, %c0_220, %c0_221] : memref<8x8x128xf32, #tpu.memory_space<vmem>>, vector<1x8x128xf32>
    %518 = vector.shape_cast %517 : vector<1x8x128xf32> to vector<8x128xf32>
    %cst_222 = arith.constant dense<0.000000e+00> : vector<8x128xf32>
    %519 = tpu.matmul %516, %18, %cst_222 {dimension_numbers = #tpu.dot_dimension_numbers<[1], [0], [0], [1], [0, 0, 1, 1], [], []>} : vector<8x64xf32>, vector<64x128xf32>, vector<8x128xf32> -> vector<8x128xf32>
    %520 = arith.addf %518, %519 : vector<8x128xf32>
    %521 = math.tanh %520 : vector<8x128xf32>
    %cst_223 = arith.constant 5.000000e-01 : f32
    %522 = vector.broadcast %cst_223 : f32 to vector<8x128xf32>
    %523 = arith.mulf %522, %521 : vector<8x128xf32>
    %cst_224 = arith.constant 5.000000e-01 : f32
    %524 = vector.broadcast %cst_224 : f32 to vector<8x128xf32>
    %525 = arith.addf %523, %524 : vector<8x128xf32>
    %526 = vector.shape_cast %5 : vector<1x128xi1> to vector<1x128xi1>
    %527 = vector.broadcast %526 : vector<1x128xi1> to vector<8x128xi1>
    %528 = arith.select %527, %525, %521 : vector<8x128xi1>, vector<8x128xf32>
    %529 = vector.extract_strided_slice %528 {offsets = [0, 0], sizes = [8, 32], strides = [1, 1]} : vector<8x128xf32> to vector<8x32xf32>
    %530 = vector.extract_strided_slice %528 {offsets = [0, 32], sizes = [8, 32], strides = [1, 1]} : vector<8x128xf32> to vector<8x32xf32>
    %531 = vector.extract_strided_slice %528 {offsets = [0, 64], sizes = [8, 32], strides = [1, 1]} : vector<8x128xf32> to vector<8x32xf32>
    %532 = vector.extract_strided_slice %528 {offsets = [0, 96], sizes = [8, 32], strides = [1, 1]} : vector<8x128xf32> to vector<8x32xf32>
    %533 = arith.mulf %530, %512 : vector<8x32xf32>
    %534 = arith.mulf %529, %531 : vector<8x32xf32>
    %535 = arith.addf %533, %534 : vector<8x32xf32>
    %536 = math.tanh %535 : vector<8x32xf32>
    %537 = arith.mulf %532, %536 : vector<8x32xf32>
    %538 = tpu.concatenate %537, %537 in 1 : vector<8x32xf32>, vector<8x32xf32> -> vector<8x64xf32>
    %539 = arith.mulf %538, %16 : vector<8x64xf32>
    %c7_225 = arith.constant 7 : index
    %c0_226 = arith.constant 0 : index
    %c0_227 = arith.constant 0 : index
    %540 = vector.load %arg12[%c7_225, %c0_226, %c0_227] : memref<8x8x128xf32, #tpu.memory_space<vmem>>, vector<1x8x128xf32>
    %541 = vector.shape_cast %540 : vector<1x8x128xf32> to vector<8x128xf32>
    %cst_228 = arith.constant dense<0.000000e+00> : vector<8x128xf32>
    %542 = tpu.matmul %539, %18, %cst_228 {dimension_numbers = #tpu.dot_dimension_numbers<[1], [0], [0], [1], [0, 0, 1, 1], [], []>} : vector<8x64xf32>, vector<64x128xf32>, vector<8x128xf32> -> vector<8x128xf32>
    %543 = arith.addf %541, %542 : vector<8x128xf32>
    %544 = math.tanh %543 : vector<8x128xf32>
    %cst_229 = arith.constant 5.000000e-01 : f32
    %545 = vector.broadcast %cst_229 : f32 to vector<8x128xf32>
    %546 = arith.mulf %545, %544 : vector<8x128xf32>
    %cst_230 = arith.constant 5.000000e-01 : f32
    %547 = vector.broadcast %cst_230 : f32 to vector<8x128xf32>
    %548 = arith.addf %546, %547 : vector<8x128xf32>
    %549 = vector.shape_cast %5 : vector<1x128xi1> to vector<1x128xi1>
    %550 = vector.broadcast %549 : vector<1x128xi1> to vector<8x128xi1>
    %551 = arith.select %550, %548, %544 : vector<8x128xi1>, vector<8x128xf32>
    %552 = vector.extract_strided_slice %551 {offsets = [0, 0], sizes = [8, 32], strides = [1, 1]} : vector<8x128xf32> to vector<8x32xf32>
    %553 = vector.extract_strided_slice %551 {offsets = [0, 32], sizes = [8, 32], strides = [1, 1]} : vector<8x128xf32> to vector<8x32xf32>
    %554 = vector.extract_strided_slice %551 {offsets = [0, 64], sizes = [8, 32], strides = [1, 1]} : vector<8x128xf32> to vector<8x32xf32>
    %555 = vector.extract_strided_slice %551 {offsets = [0, 96], sizes = [8, 32], strides = [1, 1]} : vector<8x128xf32> to vector<8x32xf32>
    %556 = arith.mulf %553, %535 : vector<8x32xf32>
    %557 = arith.mulf %552, %554 : vector<8x32xf32>
    %558 = arith.addf %556, %557 : vector<8x32xf32>
    %559 = math.tanh %558 : vector<8x32xf32>
    %560 = arith.mulf %555, %559 : vector<8x32xf32>
    %561 = tpu.concatenate %560, %560 in 1 : vector<8x32xf32>, vector<8x32xf32> -> vector<8x64xf32>
    %562 = arith.mulf %561, %16 : vector<8x64xf32>
    %563 = vector.extract_strided_slice %562 {offsets = [0, 0], sizes = [4, 64], strides = [1, 1]} : vector<8x64xf32> to vector<4x64xf32>
    %564 = vector.extract_strided_slice %562 {offsets = [4, 0], sizes = [4, 64], strides = [1, 1]} : vector<8x64xf32> to vector<4x64xf32>
    %565 = arith.addf %563, %564 : vector<4x64xf32>
    %c0_231 = arith.constant 0 : index
    %c0_232 = arith.constant 0 : index
    %566 = vector.load %arg6[%c0_231, %c0_232] : memref<64x128xf32, #tpu.memory_space<vmem>>, vector<64x128xf32>
    %cst_233 = arith.constant dense<0.000000e+00> : vector<4x128xf32>
    %567 = tpu.matmul %565, %566, %cst_233 {dimension_numbers = #tpu.dot_dimension_numbers<[1], [0], [0], [1], [0, 0, 1, 1], [], []>} : vector<4x64xf32>, vector<64x128xf32>, vector<4x128xf32> -> vector<4x128xf32>
    %c0_234 = arith.constant 0 : index
    %c0_235 = arith.constant 0 : index
    %568 = vector.load %arg7[%c0_234, %c0_235] : memref<1x128xf32, #tpu.memory_space<vmem>>, vector<1x128xf32>
    %569 = vector.broadcast %568 : vector<1x128xf32> to vector<4x128xf32>
    %570 = arith.addf %567, %569 : vector<4x128xf32>
    %cst_236 = arith.constant 0.000000e+00 : f32
    %571 = vector.broadcast %cst_236 : f32 to vector<4x128xf32>
    %572 = arith.maximumf %570, %571 : vector<4x128xf32>
    %c0_237 = arith.constant 0 : index
    %c0_238 = arith.constant 0 : index
    %573 = vector.load %arg8[%c0_237, %c0_238] : memref<128x64xf32, #tpu.memory_space<vmem>>, vector<128x64xf32>
    %cst_239 = arith.constant dense<0.000000e+00> : vector<4x64xf32>
    %574 = tpu.matmul %572, %573, %cst_239 {dimension_numbers = #tpu.dot_dimension_numbers<[1], [0], [0], [1], [0, 0, 1, 1], [], []>} : vector<4x128xf32>, vector<128x64xf32>, vector<4x64xf32> -> vector<4x64xf32>
    %c0_240 = arith.constant 0 : index
    %c0_241 = arith.constant 0 : index
    %575 = vector.load %arg9[%c0_240, %c0_241] : memref<1x64xf32, #tpu.memory_space<vmem>>, vector<1x64xf32>
    %576 = vector.broadcast %575 : vector<1x64xf32> to vector<4x64xf32>
    %577 = arith.addf %574, %576 : vector<4x64xf32>
    %578 = vector.extract_strided_slice %577 {offsets = [0, 0], sizes = [2, 64], strides = [1, 1]} : vector<4x64xf32> to vector<2x64xf32>
    %579 = vector.extract_strided_slice %577 {offsets = [2, 0], sizes = [2, 64], strides = [1, 1]} : vector<4x64xf32> to vector<2x64xf32>
    %580 = arith.mulf %578, %579 : vector<2x64xf32>
    %cst_242 = arith.constant dense<0.000000e+00> : vector<2xf32>
    %581 = vector.multi_reduction <add>, %580, %cst_242 [1] : vector<2x64xf32> to vector<2xf32>
    %582 = vector.shape_cast %581 : vector<2xf32> to vector<2x1xf32>
    %583 = arith.mulf %578, %578 : vector<2x64xf32>
    %cst_243 = arith.constant dense<0.000000e+00> : vector<2xf32>
    %584 = vector.multi_reduction <add>, %583, %cst_243 [1] : vector<2x64xf32> to vector<2xf32>
    %585 = vector.shape_cast %584 : vector<2xf32> to vector<2x1xf32>
    %586 = arith.mulf %579, %579 : vector<2x64xf32>
    %cst_244 = arith.constant dense<0.000000e+00> : vector<2xf32>
    %587 = vector.multi_reduction <add>, %586, %cst_244 [1] : vector<2x64xf32> to vector<2xf32>
    %588 = vector.shape_cast %587 : vector<2xf32> to vector<2x1xf32>
    %589 = arith.mulf %585, %588 : vector<2x1xf32>
    %590 = math.sqrt %589 : vector<2x1xf32>
    %cst_245 = arith.constant 9.99999993E-9 : f32
    %591 = vector.broadcast %cst_245 : f32 to vector<2x1xf32>
    %592 = arith.maximumf %590, %591 : vector<2x1xf32>
    %593 = arith.divf %582, %592 : vector<2x1xf32>
    %c0_246 = arith.constant 0 : index
    %c0_247 = arith.constant 0 : index
    %594 = vector.load %arg10[%c0_246, %c0_247] : memref<2x1xf32, #tpu.memory_space<vmem>>, vector<2x1xf32>
    tpu.vector_store %arg10[%c0_246, %c0_247], %593 {strides = array<i32>} : memref<2x1xf32, #tpu.memory_space<vmem>>, vector<2x1xf32>,
    return
  }
}

</mosaic_0001>

<llo_original>
// kernel: tpu_custom_call.1
$region0: #{tpu_custom_call.1}
  #allocation0 [shape = 'u32[]', space=smem, size = 0x4, offset = 0x4, fixed_abs, tag = 'smem constant byte address 0x4 - core index']
  #allocation1 [shape = 'u32[72,128]{1,0:T(1,128)}', space=vmem, size = 0x9000, scoped, tag = 'internal scratch']
  #allocation2 [shape = 'f32[8,8,128]{2,1,0:T(8,128)}', space=vmem, size = 0x8000, scoped, tag = 'scratch operand']
  #allocation3 [shape = 'f32[8,8,128]{2,1,0:T(8,128)}', space=vmem, size = 0x8000, scoped, tag = 'scratch operand']
  #allocation4 [shape = 'f32[32,64]{1,0:T(8,128)}', space=vmem, size = 0x4000, scoped, tag = 'scratch operand']
  %s0 = inlined_call_operand.vmem [shape: s32[32,1], index: 0, kind: input, shape index: {}]
  %s1 = inlined_call_operand.vmem [shape: f32[32,256], index: 1, kind: input, shape index: {}]
  %s2 = inlined_call_operand.hbm [shape: f32[64,128], index: 2, kind: input, shape index: {}]
  %s3 = inlined_call_operand.vmem [shape: f32[64,256], index: 3, kind: input, shape index: {}]
  %s4 = inlined_call_operand.vmem [shape: f32[1,256], index: 4, kind: input, shape index: {}]
  %s5 = inlined_call_operand.hbm [shape: f32[64,128], index: 5, kind: input, shape index: {}]
  %s6 = inlined_call_operand.hbm [shape: f32[64,128], index: 6, kind: input, shape index: {}]
  %s7 = inlined_call_operand.vmem [shape: f32[1,128], index: 7, kind: input, shape index: {}]
  %s8 = inlined_call_operand.vmem [shape: f32[128,64], index: 8, kind: input, shape index: {}]
  %s9 = inlined_call_operand.vmem [shape: f32[1,64], index: 9, kind: input, shape index: {}]
  %s10 = inlined_call_operand.vmem [shape: f32[2,1], index: 10, kind: output, shape index: {}]
  %s11 = sld [smem:[#allocation0]]
  $region62: #{tpu_custom_call.1} parent=0
    _
  %s13 = ssub.s32 1, %s11
  %s14 = scalar_select 0, %s13, %s11
  $region1: #{tpu_custom_call.1} parent=0
    #allocation5 [shape = 'u8[32768]{0}', space=vmem, size = 0x8000, scoped, tag = 'input window, operand 2, single buffered']
    #allocation6 [shape = 's32[1]{0}', space=sflag, size = 0x4, scoped, tag = 'scoped memory for tpu_custom_call.1']
    #allocation7 [shape = 'u8[32768]{0}', space=vmem, size = 0x8000, scoped, tag = 'input window, operand 5, single buffered']
    #allocation8 [shape = 's32[1]{0}', space=sflag, size = 0x4, scoped, tag = 'scoped memory for tpu_custom_call.1']
    #allocation9 [shape = 'u8[32768]{0}', space=vmem, size = 0x8000, scoped, tag = 'input window, operand 6, single buffered']
    %15 = vsyncpa [#allocation6], 0
    %16 = vsyncpa [#allocation8], 0
    // Predicated region
    $region2: #{tpu_custom_call.1} parent=1 // pred_check
      _
    $region3: #{tpu_custom_call.1} parent=1 // pred_check_branch
      %18 = sbr.rel (0) target = $region5
    $region4: #{tpu_custom_call.1} parent=1 // pred_region
      _
    $region5: #{tpu_custom_call.1} parent=1 // pred_fallthru
      _
    // Predicated region
    $region6: #{tpu_custom_call.1} parent=1 // pred_check
      _
    $region7: #{tpu_custom_call.1} parent=1 // pred_check_branch
      %20 = sbr.rel (0) target = $region9
    $region8: #{tpu_custom_call.1} parent=1 // pred_region
      _
    $region9: #{tpu_custom_call.1} parent=1 // pred_fallthru
      _
    // Predicated region
    $region10: #{tpu_custom_call.1} parent=1 // pred_check
      _
    $region11: #{tpu_custom_call.1} parent=1 // pred_check_branch
      %22 = sbr.rel (0) target = $region13
    $region12: #{tpu_custom_call.1} parent=1 // pred_region
      %24 = vsyncadd [#allocation6], 0
      %s25 = sshll.u32 %s2, 4
      %s26 = int_to_ptr.hbm [resolvable:$true] %s25
      %s27 = sshll.u32 [#allocation5], 4
      %s28 = int_to_ptr.vmem [resolvable:$true] %s27
      %33 = dma.hbm_to_vmem [thread:$0]  %s26, 1024, %s28, [#allocation6], 128, 128, 8
    $region13: #{tpu_custom_call.1} parent=1 // pred_fallthru
      _
    // Predicated region
    $region14: #{tpu_custom_call.1} parent=1 // pred_check
      _
    $region15: #{tpu_custom_call.1} parent=1 // pred_check_branch
      %35 = sbr.rel (0) target = $region17
    $region16: #{tpu_custom_call.1} parent=1 // pred_region
      _
    $region17: #{tpu_custom_call.1} parent=1 // pred_fallthru
      _
    // Predicated region
    $region18: #{tpu_custom_call.1} parent=1 // pred_check
      _
    $region19: #{tpu_custom_call.1} parent=1 // pred_check_branch
      %37 = sbr.rel (0) target = $region21
    $region20: #{tpu_custom_call.1} parent=1 // pred_region
      _
    $region21: #{tpu_custom_call.1} parent=1 // pred_fallthru
      _
    // Predicated region
    $region22: #{tpu_custom_call.1} parent=1 // pred_check
      _
    $region23: #{tpu_custom_call.1} parent=1 // pred_check_branch
      %39 = sbr.rel (0) target = $region25
    $region24: #{tpu_custom_call.1} parent=1 // pred_region
      %41 = vsyncadd [#allocation8], 0
      %s42 = sshll.u32 %s5, 4
      %s43 = int_to_ptr.hbm [resolvable:$true] %s42
      %s44 = sshll.u32 [#allocation7], 4
      %s45 = int_to_ptr.vmem [resolvable:$true] %s44
      %50 = dma.hbm_to_vmem [thread:$0]  %s43, 1024, %s45, [#allocation8], 128, 128, 8
    $region25: #{tpu_custom_call.1} parent=1 // pred_fallthru
      _
    // Predicated region
    $region26: #{tpu_custom_call.1} parent=1 // pred_check
      _
    $region27: #{tpu_custom_call.1} parent=1 // pred_check_branch
      %52 = sbr.rel (0) target = $region29
    $region28: #{tpu_custom_call.1} parent=1 // pred_region
      %54 = vsyncadd [#allocation8], 0
      %s55 = sshll.u32 %s6, 4
      %s56 = int_to_ptr.hbm [resolvable:$true] %s55
      %s57 = sshll.u32 [#allocation9], 4
      %s58 = int_to_ptr.vmem [resolvable:$true] %s57
      %63 = dma.hbm_to_vmem [thread:$0]  %s56, 1024, %s58, [#allocation8], 128, 128, 8
    $region29: #{tpu_custom_call.1} parent=1 // pred_fallthru
      _
    // Predicated region
    $region30: #{tpu_custom_call.1} parent=1 // pred_check
      _
    $region31: #{tpu_custom_call.1} parent=1 // pred_check_branch
      %65 = sbr.rel (0) target = $region33
    $region32: #{tpu_custom_call.1} parent=1 // pred_region
      _
    $region33: #{tpu_custom_call.1} parent=1 // pred_fallthru
      _
    // Predicated region
    $region34: #{tpu_custom_call.1} parent=1 // pred_check
      _
    $region35: #{tpu_custom_call.1} parent=1 // pred_check_branch
      %67 = sbr.rel (0) target = $region37
    $region36: #{tpu_custom_call.1} parent=1 // pred_region
      _
    $region37: #{tpu_custom_call.1} parent=1 // pred_fallthru
      _
    // Predicated region
    $region38: #{tpu_custom_call.1} parent=1 // pred_check
      _
    $region39: #{tpu_custom_call.1} parent=1 // pred_check_branch
      %69 = sbr.rel (0) target = $region41
    $region40: #{tpu_custom_call.1} parent=1 // pred_region
      _
    $region41: #{tpu_custom_call.1} parent=1 // pred_fallthru
      _
    // Predicated region
    $region42: #{tpu_custom_call.1} parent=1 // pred_check
      _
    $region43: #{tpu_custom_call.1} parent=1 // pred_check_branch
      %71 = sbr.rel (0) target = $region45
    $region44: #{tpu_custom_call.1} parent=1 // pred_region
      %73 = dma.done [#allocation6], 1024
    $region45: #{tpu_custom_call.1} parent=1 // pred_fallthru
      _
    // Predicated region
    $region46: #{tpu_custom_call.1} parent=1 // pred_check
      _
    $region47: #{tpu_custom_call.1} parent=1 // pred_check_branch
      %75 = sbr.rel (0) target = $region49
    $region48: #{tpu_custom_call.1} parent=1 // pred_region
      %77 = dma.done [#allocation8], 1024
    $region49: #{tpu_custom_call.1} parent=1 // pred_fallthru
      _
    // Predicated region
    $region50: #{tpu_custom_call.1} parent=1 // pred_check
      _
    $region51: #{tpu_custom_call.1} parent=1 // pred_check_branch
      %79 = sbr.rel (0) target = $region53
    $region52: #{tpu_custom_call.1} parent=1 // pred_region
      %81 = dma.done [#allocation8], 1024
    $region53: #{tpu_custom_call.1} parent=1 // pred_fallthru
      _
    %v82 = vlaneseq
    %v83 = vand.u32 %v82, 127
    %vm84 = vcmp.lt.s32.totalorder %v83, 64
    %vm85 = vcmp.ge.s32.totalorder %v83, 96
    %vm86 = vmor %vm84, %vm85
    %v87 = vlaneseq
    %v88 = vshrl.u32 %v87, 7
    %vm89 = vcmp.lt.s32.totalorder %v88, 4
    %vm90 = vcmp.lt.s32.totalorder %v83, 32
    %vm91 = vmxor %vm89, %vm90
    %vm92 = vmxor %vm91, 1
    %v93 = vsel %vm92, 1.0, 0.0
    %v94 = vld [vmem:[#allocation5] sm:$0xff]
    %v95 = vld [vmem:[#allocation5 + $0x8] sm:$0xff]
    %v96 = vld [vmem:[#allocation5 + $0x10] sm:$0xff]
    %v97 = vld [vmem:[#allocation5 + $0x18] sm:$0xff]
    %v98 = vld [vmem:[#allocation5 + $0x20] sm:$0xff]
    %v99 = vld [vmem:[#allocation5 + $0x28] sm:$0xff]
    %v100 = vld [vmem:[#allocation5 + $0x30] sm:$0xff]
    %v101 = vld [vmem:[#allocation5 + $0x38] sm:$0xff]
    %v102 = vld [vmem:[#allocation7] sm:$0xff]
    %v103 = vld [vmem:[#allocation7 + $0x8] sm:$0xff]
    %v104 = vld [vmem:[#allocation7 + $0x10] sm:$0xff]
    %v105 = vld [vmem:[#allocation7 + $0x18] sm:$0xff]
    %v106 = vld [vmem:[#allocation7 + $0x20] sm:$0xff]
    %v107 = vld [vmem:[#allocation7 + $0x28] sm:$0xff]
    %v108 = vld [vmem:[#allocation7 + $0x30] sm:$0xff]
    %v109 = vld [vmem:[#allocation7 + $0x38] sm:$0xff]
    %v110 = vld [vmem:[%s0] sm:$0xff]
    %v111 = vld [vmem:[%s0 + $0x8] sm:$0xff]
    %v112 = vld [vmem:[%s0 + $0x10] sm:$0xff]
    %v113 = vld [vmem:[%s0 + $0x18] sm:$0xff]
    %114 = vset.pattern.permute.xlu0 0
    %115 = vperm.xlu0 %114, %v110
    %v116 = vpop.permute.xlu0 %115
    %117 = vset.pattern.permute.xlu0 0
    %118 = vperm.xlu0 %117, %v111
    %v119 = vpop.permute.xlu0 %118
    %120 = vset.pattern.permute.xlu0 0
    %121 = vperm.xlu0 %120, %v112
    %v122 = vpop.permute.xlu0 %121
    %123 = vset.pattern.permute.xlu0 0
    %124 = vperm.xlu0 %123, %v113
    %v125 = vpop.permute.xlu0 %124
    %vm126 = vcmp.eq.s32.totalorder %v116, %v83
    %vm127 = vcmp.eq.s32.totalorder %v119, %v83
    %vm128 = vcmp.eq.s32.totalorder %v122, %v83
    %vm129 = vcmp.eq.s32.totalorder %v125, %v83
    %v130 = vsel %vm126, 1, 0
    %v131 = vsel %vm127, 1, 0
    %v132 = vsel %vm128, 1, 0
    %v133 = vsel %vm129, 1, 0
    %v134 = vcvt.s32.f32 %v130
    %v135 = vcvt.s32.f32 %v131
    %v136 = vcvt.s32.f32 %v132
    %v137 = vcvt.s32.f32 %v133
    %v138 = vld [vmem:[%s1] sm:$0xff]
    %v139 = vld [vmem:[%s1 + $0x8] sm:$0xff]
    %v140 = vld [vmem:[%s1 + $0x10] sm:$0xff]
    %v141 = vld [vmem:[%s1 + $0x18] sm:$0xff]
    %v142 = vld [vmem:[%s1 + $0x20] sm:$0xff]
    %v143 = vld [vmem:[%s1 + $0x28] sm:$0xff]
    %v144 = vld [vmem:[%s1 + $0x30] sm:$0xff]
    %v145 = vld [vmem:[%s1 + $0x38] sm:$0xff]
    %vm146 = vcmask 261120
    %v148 = vsel %vm146, %v134, 0
    %v151 = vsel %vm146, %v135, 0
    %v154 = vsel %vm146, %v136, 0
    %v157 = vsel %vm146, %v137, 0
    %159 = vmatpush.msra.mxu0 0.0
    %160 = vmatpush.msra.mxu0 0.0
    %161 = vmatpush.msra.mxu0 0.0
    %162 = vmatpush.msra.mxu0 0.0
    %163 = vmatpush.msra.mxu0 0.0
    %164 = vmatpush.msra.mxu0 0.0
    %165 = vmatpush.msra.mxu0 0.0
    %166 = vmatpush.msra.mxu0 0.0
    %167 = vmatpush.msra.mxu0 0.0
    %168 = vmatpush.msra.mxu0 0.0
    %169 = vmatpush.msra.mxu0 0.0
    %170 = vmatpush.msra.mxu0 0.0
    %171 = vmatpush.msra.mxu0 %v144
    %172 = vmatpush.msra.mxu0 %v142
    %173 = vmatpush.msra.mxu0 %v140
    %174 = vmatpush.msra.mxu0 %v138
    %175 = vmatmul.f32.gmra.mxu0 %v148
    %v176 = vpop.f32.mrf.mxu0
    %v177 = vadd.f32 0.0, %v176
    %178 = vmatmul.f32.gmra.mxu0 %v151
    %v179 = vpop.f32.mrf.mxu0
    %v180 = vadd.f32 0.0, %v179
    %181 = vmatmul.f32.gmra.mxu0 %v154
    %v182 = vpop.f32.mrf.mxu0
    %v183 = vadd.f32 0.0, %v182
    %184 = vmatmul.f32.gmra.mxu0 %v157
    %v185 = vpop.f32.mrf.mxu0
    %v186 = vadd.f32 0.0, %v185
    %187 = vdwg.mxu0
    %188 = vmatpush.msra.mxu0 0.0
    %189 = vmatpush.msra.mxu0 0.0
    %190 = vmatpush.msra.mxu0 0.0
    %191 = vmatpush.msra.mxu0 0.0
    %192 = vmatpush.msra.mxu0 0.0
    %193 = vmatpush.msra.mxu0 0.0
    %194 = vmatpush.msra.mxu0 0.0
    %195 = vmatpush.msra.mxu0 0.0
    %196 = vmatpush.msra.mxu0 0.0
    %197 = vmatpush.msra.mxu0 0.0
    %198 = vmatpush.msra.mxu0 0.0
    %199 = vmatpush.msra.mxu0 0.0
    %200 = vmatpush.msra.mxu0 %v145
    %201 = vmatpush.msra.mxu0 %v143
    %202 = vmatpush.msra.mxu0 %v141
    %203 = vmatpush.msra.mxu0 %v139
    %204 = vmatmul.f32.gmra.mxu0 %v148
    %v205 = vpop.f32.mrf.mxu0
    %v206 = vadd.f32 0.0, %v205
    %207 = vmatmul.f32.gmra.mxu0 %v151
    %v208 = vpop.f32.mrf.mxu0
    %v209 = vadd.f32 0.0, %v208
    %210 = vmatmul.f32.gmra.mxu0 %v154
    %v211 = vpop.f32.mrf.mxu0
    %v212 = vadd.f32 0.0, %v211
    %213 = vmatmul.f32.gmra.mxu0 %v157
    %v214 = vpop.f32.mrf.mxu0
    %v215 = vadd.f32 0.0, %v214
    %216 = vdwg.mxu0
    %217 = vst [vmem:[#allocation2] sm:$0xf] %v177
    %218 = vst [vmem:[#allocation2] sm:$0xf0] %v215
    %s219 = scalar_lea.vmem [#allocation2], 8
    %220 = vst [vmem:[%s219 - $0x4] sm:$0xf0] %v177
    %221 = vst [vmem:[%s219 + $0x4] sm:$0xf] %v215
    %s222 = scalar_lea.vmem [#allocation2], 16
    %223 = vst [vmem:[%s222] sm:$0xf] %v180
    %224 = vst [vmem:[%s222] sm:$0xf0] %v212
    %s225 = scalar_lea.vmem [#allocation2], 24
    %226 = vst [vmem:[%s225 - $0x4] sm:$0xf0] %v180
    %227 = vst [vmem:[%s225 + $0x4] sm:$0xf] %v212
    %s228 = scalar_lea.vmem [#allocation2], 32
    %229 = vst [vmem:[%s228] sm:$0xf] %v183
    %230 = vst [vmem:[%s228] sm:$0xf0] %v209
    %s231 = scalar_lea.vmem [#allocation2], 40
    %232 = vst [vmem:[%s231 - $0x4] sm:$0xf0] %v183
    %233 = vst [vmem:[%s231 + $0x4] sm:$0xf] %v209
    %s234 = scalar_lea.vmem [#allocation2], 48
    %235 = vst [vmem:[%s234] sm:$0xf] %v186
    %236 = vst [vmem:[%s234] sm:$0xf0] %v206
    %s237 = scalar_lea.vmem [#allocation2], 56
    %238 = vst [vmem:[%s237 - $0x4] sm:$0xf0] %v186
    %239 = vst [vmem:[%s237 + $0x4] sm:$0xf] %v206
    %v240 = vld [vmem:[#allocation2] sm:$0xff]
    %vm241 = vcmask 523264
    %v243 = vsel %vm241, 0.0, 0
    %245 = vmatpush.msra.mxu0 0.0
    %246 = vmatpush.msra.mxu0 0.0
    %247 = vmatpush.msra.mxu0 0.0
    %248 = vmatpush.msra.mxu0 0.0
    %249 = vmatpush.msra.mxu0 0.0
    %250 = vmatpush.msra.mxu0 0.0
    %251 = vmatpush.msra.mxu0 0.0
    %252 = vmatpush.msra.mxu0 0.0
    %253 = vmatpush.msra.mxu0 %v101
    %254 = vmatpush.msra.mxu0 %v100
    %255 = vmatpush.msra.mxu0 %v99
    %256 = vmatpush.msra.mxu0 %v98
    %257 = vmatpush.msra.mxu0 %v97
    %258 = vmatpush.msra.mxu0 %v96
    %259 = vmatpush.msra.mxu0 %v95
    %260 = vmatpush.msra.mxu0 %v94
    %261 = vmatmul.f32.gmra.mxu0 %v243
    %v262 = vpop.f32.mrf.mxu0
    %v263 = vadd.f32 0.0, %v262
    %264 = vdwg.mxu0
    %v265 = vadd.f32 %v240, %v263
    %v266 = vtanh.pop %v265
    %v267 = vmul.f32 %v266, 0.5
    %v268 = vadd.f32 %v267, 0.5
    %v269 = vsel %vm86, 1, 0
    %vm270 = vcmp.eq.s32.totalorder %v269, 1
    %v271 = vsel %vm270, %v268, %v266
    %v272 = vmul.f32 %v271, 0.0
    %274 = vrot.lane.b32.xlu0 %v271, 64
    %v275 = vpop.permute.xlu0 %274
    %v277 = vmul.f32 %v271, %v275
    %279 = vrot.lane.b32.xlu0 %v277, 32
    %v280 = vpop.permute.xlu0 %279
    %v282 = vadd.f32 %v272, %v280
    %v283 = vtanh.pop %v282
    %285 = vrot.lane.b32.xlu0 %v283, 64
    %v286 = vpop.permute.xlu0 %285
    %v288 = vmul.f32 %v271, %v286
    %290 = vrot.lane.b32.xlu0 %v288, 32
    %v291 = vpop.permute.xlu0 %290
    %293 = vrot.lane.b32.xlu0 %v288, 64
    %v294 = vpop.permute.xlu0 %293
    %v296 = vsel %vm146, %v291, %v294
    %v297 = vmul.f32 %v296, %v93
    %vm298 = vcmask 257024
    %299 = vst.msk [vmem:[#allocation4] sm:$0xf] %vm298, %v291
    %vm300 = vcmask 523524
    %301 = vst.msk [vmem:[#allocation4 + $0x18] sm:$0xf0] %vm300, %v294
    %v302 = vld [vmem:[%s219] sm:$0xff]
    %v304 = vsel %vm241, %v297, 0
    %306 = vmatpush.msra.mxu0 0.0
    %307 = vmatpush.msra.mxu0 0.0
    %308 = vmatpush.msra.mxu0 0.0
    %309 = vmatpush.msra.mxu0 0.0
    %310 = vmatpush.msra.mxu0 0.0
    %311 = vmatpush.msra.mxu0 0.0
    %312 = vmatpush.msra.mxu0 0.0
    %313 = vmatpush.msra.mxu0 0.0
    %314 = vmatpush.msra.mxu0 %v101
    %315 = vmatpush.msra.mxu0 %v100
    %316 = vmatpush.msra.mxu0 %v99
    %317 = vmatpush.msra.mxu0 %v98
    %318 = vmatpush.msra.mxu0 %v97
    %319 = vmatpush.msra.mxu0 %v96
    %320 = vmatpush.msra.mxu0 %v95
    %321 = vmatpush.msra.mxu0 %v94
    %322 = vmatmul.f32.gmra.mxu0 %v304
    %v323 = vpop.f32.mrf.mxu0
    %v324 = vadd.f32 0.0, %v323
    %325 = vdwg.mxu0
    %v326 = vadd.f32 %v302, %v324
    %v327 = vtanh.pop %v326
    %v328 = vmul.f32 %v327, 0.5
    %v329 = vadd.f32 %v328, 0.5
    %v330 = vsel %vm270, %v329, %v327
    %v331 = vmul.f32 %v330, %v282
    %333 = vrot.lane.b32.xlu0 %v330, 64
    %v334 = vpop.permute.xlu0 %333
    %v336 = vmul.f32 %v330, %v334
    %338 = vrot.lane.b32.xlu0 %v336, 32
    %v339 = vpop.permute.xlu0 %338
    %v341 = vadd.f32 %v331, %v339
    %v342 = vtanh.pop %v341
    %344 = vrot.lane.b32.xlu0 %v342, 64
    %v345 = vpop.permute.xlu0 %344
    %v347 = vmul.f32 %v330, %v345
    %349 = vrot.lane.b32.xlu0 %v347, 32
    %v350 = vpop.permute.xlu0 %349
    %352 = vrot.lane.b32.xlu0 %v347, 64
    %v353 = vpop.permute.xlu0 %352
    %v355 = vsel %vm146, %v350, %v353
    %v356 = vmul.f32 %v355, %v93
    %357 = vst.msk [vmem:[#allocation4 + $0x4] sm:$0xf] %vm298, %v350
    %358 = vst.msk [vmem:[#allocation4 + $0x14] sm:$0xf0] %vm300, %v353
    %v359 = vld [vmem:[%s222] sm:$0xff]
    %v361 = vsel %vm241, %v356, 0
    %363 = vmatpush.msra.mxu0 0.0
    %364 = vmatpush.msra.mxu0 0.0
    %365 = vmatpush.msra.mxu0 0.0
    %366 = vmatpush.msra.mxu0 0.0
    %367 = vmatpush.msra.mxu0 0.0
    %368 = vmatpush.msra.mxu0 0.0
    %369 = vmatpush.msra.mxu0 0.0
    %370 = vmatpush.msra.mxu0 0.0
    %371 = vmatpush.msra.mxu0 %v101
    %372 = vmatpush.msra.mxu0 %v100
    %373 = vmatpush.msra.mxu0 %v99
    %374 = vmatpush.msra.mxu0 %v98
    %375 = vmatpush.msra.mxu0 %v97
    %376 = vmatpush.msra.mxu0 %v96
    %377 = vmatpush.msra.mxu0 %v95
    %378 = vmatpush.msra.mxu0 %v94
    %379 = vmatmul.f32.gmra.mxu0 %v361
    %v380 = vpop.f32.mrf.mxu0
    %v381 = vadd.f32 0.0, %v380
    %382 = vdwg.mxu0
    %v383 = vadd.f32 %v359, %v381
    %v384 = vtanh.pop %v383
    %v385 = vmul.f32 %v384, 0.5
    %v386 = vadd.f32 %v385, 0.5
    %v387 = vsel %vm270, %v386, %v384
    %v388 = vmul.f32 %v387, %v341
    %390 = vrot.lane.b32.xlu0 %v387, 64
    %v391 = vpop.permute.xlu0 %390
    %v393 = vmul.f32 %v387, %v391
    %395 = vrot.lane.b32.xlu0 %v393, 32
    %v396 = vpop.permute.xlu0 %395
    %v398 = vadd.f32 %v388, %v396
    %v399 = vtanh.pop %v398
    %401 = vrot.lane.b32.xlu0 %v399, 64
    %v402 = vpop.permute.xlu0 %401
    %v404 = vmul.f32 %v387, %v402
    %406 = vrot.lane.b32.xlu0 %v404, 32
    %v407 = vpop.permute.xlu0 %406
    %409 = vrot.lane.b32.xlu0 %v404, 64
    %v410 = vpop.permute.xlu0 %409
    %v412 = vsel %vm146, %v407, %v410
    %v413 = vmul.f32 %v412, %v93
    %414 = vst.msk [vmem:[#allocation4 + $0x8] sm:$0xf] %vm298, %v407
    %415 = vst.msk [vmem:[#allocation4 + $0x10] sm:$0xf0] %vm300, %v410
    %v416 = vld [vmem:[%s225] sm:$0xff]
    %v418 = vsel %vm241, %v413, 0
    %420 = vmatpush.msra.mxu0 0.0
    %421 = vmatpush.msra.mxu0 0.0
    %422 = vmatpush.msra.mxu0 0.0
    %423 = vmatpush.msra.mxu0 0.0
    %424 = vmatpush.msra.mxu0 0.0
    %425 = vmatpush.msra.mxu0 0.0
    %426 = vmatpush.msra.mxu0 0.0
    %427 = vmatpush.msra.mxu0 0.0
    %428 = vmatpush.msra.mxu0 %v101
    %429 = vmatpush.msra.mxu0 %v100
    %430 = vmatpush.msra.mxu0 %v99
    %431 = vmatpush.msra.mxu0 %v98
    %432 = vmatpush.msra.mxu0 %v97
    %433 = vmatpush.msra.mxu0 %v96
    %434 = vmatpush.msra.mxu0 %v95
    %435 = vmatpush.msra.mxu0 %v94
    %436 = vmatmul.f32.gmra.mxu0 %v418
    %v437 = vpop.f32.mrf.mxu0
    %v438 = vadd.f32 0.0, %v437
    %439 = vdwg.mxu0
    %v440 = vadd.f32 %v416, %v438
    %v441 = vtanh.pop %v440
    %v442 = vmul.f32 %v441, 0.5
    %v443 = vadd.f32 %v442, 0.5
    %v444 = vsel %vm270, %v443, %v441
    %v445 = vmul.f32 %v444, %v398
    %447 = vrot.lane.b32.xlu0 %v444, 64
    %v448 = vpop.permute.xlu0 %447
    %v450 = vmul.f32 %v444, %v448
    %452 = vrot.lane.b32.xlu0 %v450, 32
    %v453 = vpop.permute.xlu0 %452
    %v455 = vadd.f32 %v445, %v453
    %v456 = vtanh.pop %v455
    %458 = vrot.lane.b32.xlu0 %v456, 64
    %v459 = vpop.permute.xlu0 %458
    %v461 = vmul.f32 %v444, %v459
    %463 = vrot.lane.b32.xlu0 %v461, 32
    %v464 = vpop.permute.xlu0 %463
    %466 = vrot.lane.b32.xlu0 %v461, 64
    %v467 = vpop.permute.xlu0 %466
    %v469 = vsel %vm146, %v464, %v467
    %v470 = vmul.f32 %v469, %v93
    %471 = vst.msk [vmem:[#allocation4 + $0xc] sm:$0xf] %vm298, %v464
    %472 = vst.msk [vmem:[#allocation4 + $0xc] sm:$0xf0] %vm300, %v467
    %v473 = vld [vmem:[%s228] sm:$0xff]
    %v475 = vsel %vm241, %v470, 0
    %477 = vmatpush.msra.mxu0 0.0
    %478 = vmatpush.msra.mxu0 0.0
    %479 = vmatpush.msra.mxu0 0.0
    %480 = vmatpush.msra.mxu0 0.0
    %481 = vmatpush.msra.mxu0 0.0
    %482 = vmatpush.msra.mxu0 0.0
    %483 = vmatpush.msra.mxu0 0.0
    %484 = vmatpush.msra.mxu0 0.0
    %485 = vmatpush.msra.mxu0 %v101
    %486 = vmatpush.msra.mxu0 %v100
    %487 = vmatpush.msra.mxu0 %v99
    %488 = vmatpush.msra.mxu0 %v98
    %489 = vmatpush.msra.mxu0 %v97
    %490 = vmatpush.msra.mxu0 %v96
    %491 = vmatpush.msra.mxu0 %v95
    %492 = vmatpush.msra.mxu0 %v94
    %493 = vmatmul.f32.gmra.mxu0 %v475
    %v494 = vpop.f32.mrf.mxu0
    %v495 = vadd.f32 0.0, %v494
    %496 = vdwg.mxu0
    %v497 = vadd.f32 %v473, %v495
    %v498 = vtanh.pop %v497
    %v499 = vmul.f32 %v498, 0.5
    %v500 = vadd.f32 %v499, 0.5
    %v501 = vsel %vm270, %v500, %v498
    %v502 = vmul.f32 %v501, %v455
    %504 = vrot.lane.b32.xlu0 %v501, 64
    %v505 = vpop.permute.xlu0 %504
    %v507 = vmul.f32 %v501, %v505
    %509 = vrot.lane.b32.xlu0 %v507, 32
    %v510 = vpop.permute.xlu0 %509
    %v512 = vadd.f32 %v502, %v510
    %v513 = vtanh.pop %v512
    %515 = vrot.lane.b32.xlu0 %v513, 64
    %v516 = vpop.permute.xlu0 %515
    %v518 = vmul.f32 %v501, %v516
    %520 = vrot.lane.b32.xlu0 %v518, 32
    %v521 = vpop.permute.xlu0 %520
    %523 = vrot.lane.b32.xlu0 %v518, 64
    %v524 = vpop.permute.xlu0 %523
    %v526 = vsel %vm146, %v521, %v524
    %v527 = vmul.f32 %v526, %v93
    %528 = vst.msk [vmem:[#allocation4 + $0x10] sm:$0xf] %vm298, %v521
    %529 = vst.msk [vmem:[#allocation4 + $0x8] sm:$0xf0] %vm300, %v524
    %v530 = vld [vmem:[%s231] sm:$0xff]
    %v532 = vsel %vm241, %v527, 0
    %534 = vmatpush.msra.mxu0 0.0
    %535 = vmatpush.msra.mxu0 0.0
    %536 = vmatpush.msra.mxu0 0.0
    %537 = vmatpush.msra.mxu0 0.0
    %538 = vmatpush.msra.mxu0 0.0
    %539 = vmatpush.msra.mxu0 0.0
    %540 = vmatpush.msra.mxu0 0.0
    %541 = vmatpush.msra.mxu0 0.0
    %542 = vmatpush.msra.mxu0 %v101
    %543 = vmatpush.msra.mxu0 %v100
    %544 = vmatpush.msra.mxu0 %v99
    %545 = vmatpush.msra.mxu0 %v98
    %546 = vmatpush.msra.mxu0 %v97
    %547 = vmatpush.msra.mxu0 %v96
    %548 = vmatpush.msra.mxu0 %v95
    %549 = vmatpush.msra.mxu0 %v94
    %550 = vmatmul.f32.gmra.mxu0 %v532
    %v551 = vpop.f32.mrf.mxu0
    %v552 = vadd.f32 0.0, %v551
    %553 = vdwg.mxu0
    %v554 = vadd.f32 %v530, %v552
    %v555 = vtanh.pop %v554
    %v556 = vmul.f32 %v555, 0.5
    %v557 = vadd.f32 %v556, 0.5
    %v558 = vsel %vm270, %v557, %v555
    %v559 = vmul.f32 %v558, %v512
    %561 = vrot.lane.b32.xlu0 %v558, 64
    %v562 = vpop.permute.xlu0 %561
    %v564 = vmul.f32 %v558, %v562
    %566 = vrot.lane.b32.xlu0 %v564, 32
    %v567 = vpop.permute.xlu0 %566
    %v569 = vadd.f32 %v559, %v567
    %v570 = vtanh.pop %v569
    %572 = vrot.lane.b32.xlu0 %v570, 64
    %v573 = vpop.permute.xlu0 %572
    %v575 = vmul.f32 %v558, %v573
    %577 = vrot.lane.b32.xlu0 %v575, 32
    %v578 = vpop.permute.xlu0 %577
    %580 = vrot.lane.b32.xlu0 %v575, 64
    %v581 = vpop.permute.xlu0 %580
    %v583 = vsel %vm146, %v578, %v581
    %v584 = vmul.f32 %v583, %v93
    %585 = vst.msk [vmem:[#allocation4 + $0x14] sm:$0xf] %vm298, %v578
    %586 = vst.msk [vmem:[#allocation4 + $0x4] sm:$0xf0] %vm300, %v581
    %v587 = vld [vmem:[%s234] sm:$0xff]
    %v589 = vsel %vm241, %v584, 0
    %591 = vmatpush.msra.mxu0 0.0
    %592 = vmatpush.msra.mxu0 0.0
    %593 = vmatpush.msra.mxu0 0.0
    %594 = vmatpush.msra.mxu0 0.0
    %595 = vmatpush.msra.mxu0 0.0
    %596 = vmatpush.msra.mxu0 0.0
    %597 = vmatpush.msra.mxu0 0.0
    %598 = vmatpush.msra.mxu0 0.0
    %599 = vmatpush.msra.mxu0 %v101
    %600 = vmatpush.msra.mxu0 %v100
    %601 = vmatpush.msra.mxu0 %v99
    %602 = vmatpush.msra.mxu0 %v98
    %603 = vmatpush.msra.mxu0 %v97
    %604 = vmatpush.msra.mxu0 %v96
    %605 = vmatpush.msra.mxu0 %v95
    %606 = vmatpush.msra.mxu0 %v94
    %607 = vmatmul.f32.gmra.mxu0 %v589
    %v608 = vpop.f32.mrf.mxu0
    %v609 = vadd.f32 0.0, %v608
    %610 = vdwg.mxu0
    %v611 = vadd.f32 %v587, %v609
    %v612 = vtanh.pop %v611
    %v613 = vmul.f32 %v612, 0.5
    %v614 = vadd.f32 %v613, 0.5
    %v615 = vsel %vm270, %v614, %v612
    %v616 = vmul.f32 %v615, %v569
    %618 = vrot.lane.b32.xlu0 %v615, 64
    %v619 = vpop.permute.xlu0 %618
    %v621 = vmul.f32 %v615, %v619
    %623 = vrot.lane.b32.xlu0 %v621, 32
    %v624 = vpop.permute.xlu0 %623
    %v626 = vadd.f32 %v616, %v624
    %v627 = vtanh.pop %v626
    %629 = vrot.lane.b32.xlu0 %v627, 64
    %v630 = vpop.permute.xlu0 %629
    %v632 = vmul.f32 %v615, %v630
    %634 = vrot.lane.b32.xlu0 %v632, 32
    %v635 = vpop.permute.xlu0 %634
    %637 = vrot.lane.b32.xlu0 %v632, 64
    %v638 = vpop.permute.xlu0 %637
    %v640 = vsel %vm146, %v635, %v638
    %v641 = vmul.f32 %v640, %v93
    %642 = vst.msk [vmem:[#allocation4 + $0x18] sm:$0xf] %vm298, %v635
    %643 = vst.msk [vmem:[#allocation4] sm:$0xf0] %vm300, %v638
    %v644 = vld [vmem:[%s237] sm:$0xff]
    %v646 = vsel %vm241, %v641, 0
    %648 = vmatpush.msra.mxu0 0.0
    %649 = vmatpush.msra.mxu0 0.0
    %650 = vmatpush.msra.mxu0 0.0
    %651 = vmatpush.msra.mxu0 0.0
    %652 = vmatpush.msra.mxu0 0.0
    %653 = vmatpush.msra.mxu0 0.0
    %654 = vmatpush.msra.mxu0 0.0
    %655 = vmatpush.msra.mxu0 0.0
    %656 = vmatpush.msra.mxu0 %v101
    %657 = vmatpush.msra.mxu0 %v100
    %658 = vmatpush.msra.mxu0 %v99
    %659 = vmatpush.msra.mxu0 %v98
    %660 = vmatpush.msra.mxu0 %v97
    %661 = vmatpush.msra.mxu0 %v96
    %662 = vmatpush.msra.mxu0 %v95
    %663 = vmatpush.msra.mxu0 %v94
    %664 = vmatmul.f32.gmra.mxu0 %v646
    %v665 = vpop.f32.mrf.mxu0
    %v666 = vadd.f32 0.0, %v665
    %667 = vdwg.mxu0
    %v668 = vadd.f32 %v644, %v666
    %v669 = vtanh.pop %v668
    %v670 = vmul.f32 %v669, 0.5
    %v671 = vadd.f32 %v670, 0.5
    %v672 = vsel %vm270, %v671, %v669
    %v673 = vmul.f32 %v672, %v626
    %675 = vrot.lane.b32.xlu0 %v672, 64
    %v676 = vpop.permute.xlu0 %675
    %v678 = vmul.f32 %v672, %v676
    %680 = vrot.lane.b32.xlu0 %v678, 32
    %v681 = vpop.permute.xlu0 %680
    %v683 = vadd.f32 %v673, %v681
    %v684 = vtanh.pop %v683
    %686 = vrot.lane.b32.xlu0 %v684, 64
    %v687 = vpop.permute.xlu0 %686
    %v689 = vmul.f32 %v672, %v687
    %691 = vrot.lane.b32.xlu0 %v689, 32
    %v692 = vpop.permute.xlu0 %691
    %694 = vst.msk [vmem:[#allocation4 + $0x1c] sm:$0xf] %vm298, %v692
    %695 = vrot.lane.b32.xlu0 %v689, 64
    %v696 = vpop.permute.xlu0 %695
    %698 = vst.msk [vmem:[#allocation4 - $0x4] sm:$0xf0] %vm300, %v696
    %v699 = vld [vmem:[#allocation4] sm:$0xff]
    %v700 = vld [vmem:[#allocation4 + $0x8] sm:$0xff]
    %v701 = vld [vmem:[#allocation4 + $0x10] sm:$0xff]
    %v702 = vld [vmem:[#allocation4 + $0x18] sm:$0xff]
    %v703 = vld [vmem:[%s3] sm:$0xff]
    %v704 = vld [vmem:[%s3 + $0x8] sm:$0xff]
    %v705 = vld [vmem:[%s3 + $0x10] sm:$0xff]
    %v706 = vld [vmem:[%s3 + $0x18] sm:$0xff]
    %v707 = vld [vmem:[%s3 + $0x20] sm:$0xff]
    %v708 = vld [vmem:[%s3 + $0x28] sm:$0xff]
    %v709 = vld [vmem:[%s3 + $0x30] sm:$0xff]
    %v710 = vld [vmem:[%s3 + $0x38] sm:$0xff]
    %v711 = vld [vmem:[%s3 + $0x40] sm:$0xff]
    %v712 = vld [vmem:[%s3 + $0x48] sm:$0xff]
    %v713 = vld [vmem:[%s3 + $0x50] sm:$0xff]
    %v714 = vld [vmem:[%s3 + $0x58] sm:$0xff]
    %v715 = vld [vmem:[%s3 + $0x60] sm:$0xff]
    %v716 = vld [vmem:[%s3 + $0x68] sm:$0xff]
    %v717 = vld [vmem:[%s3 + $0x70] sm:$0xff]
    %v718 = vld [vmem:[%s3 + $0x78] sm:$0xff]
    %v719 = vld [vmem:[%s4] sm:$0x3]
    %v721 = vperm.slane %v719, 0
    %v722 = vperm.slane %v719, 1
    %v726 = vsel %vm241, %v699, 0
    %v729 = vsel %vm241, %v700, 0
    %v732 = vsel %vm241, %v701, 0
    %v735 = vsel %vm241, %v702, 0
    %737 = vmatpush.msra.mxu0 0.0
    %738 = vmatpush.msra.mxu0 0.0
    %739 = vmatpush.msra.mxu0 0.0
    %740 = vmatpush.msra.mxu0 0.0
    %741 = vmatpush.msra.mxu0 0.0
    %742 = vmatpush.msra.mxu0 0.0
    %743 = vmatpush.msra.mxu0 0.0
    %744 = vmatpush.msra.mxu0 0.0
    %745 = vmatpush.msra.mxu0 %v717
    %746 = vmatpush.msra.mxu0 %v715
    %747 = vmatpush.msra.mxu0 %v713
    %748 = vmatpush.msra.mxu0 %v711
    %749 = vmatpush.msra.mxu0 %v709
    %750 = vmatpush.msra.mxu0 %v707
    %751 = vmatpush.msra.mxu0 %v705
    %752 = vmatpush.msra.mxu0 %v703
    %753 = vmatmul.f32.gmra.mxu0 %v726
    %v754 = vpop.f32.mrf.mxu0
    %v755 = vadd.f32 %v721, %v754
    %756 = vmatmul.f32.gmra.mxu0 %v729
    %v757 = vpop.f32.mrf.mxu0
    %v758 = vadd.f32 %v721, %v757
    %759 = vmatmul.f32.gmra.mxu0 %v732
    %v760 = vpop.f32.mrf.mxu0
    %v761 = vadd.f32 %v721, %v760
    %762 = vmatmul.f32.gmra.mxu0 %v735
    %v763 = vpop.f32.mrf.mxu0
    %v764 = vadd.f32 %v721, %v763
    %765 = vdwg.mxu0
    %766 = vmatpush.msra.mxu0 0.0
    %767 = vmatpush.msra.mxu0 0.0
    %768 = vmatpush.msra.mxu0 0.0
    %769 = vmatpush.msra.mxu0 0.0
    %770 = vmatpush.msra.mxu0 0.0
    %771 = vmatpush.msra.mxu0 0.0
    %772 = vmatpush.msra.mxu0 0.0
    %773 = vmatpush.msra.mxu0 0.0
    %774 = vmatpush.msra.mxu0 %v718
    %775 = vmatpush.msra.mxu0 %v716
    %776 = vmatpush.msra.mxu0 %v714
    %777 = vmatpush.msra.mxu0 %v712
    %778 = vmatpush.msra.mxu0 %v710
    %779 = vmatpush.msra.mxu0 %v708
    %780 = vmatpush.msra.mxu0 %v706
    %781 = vmatpush.msra.mxu0 %v704
    %782 = vmatmul.f32.gmra.mxu0 %v726
    %v783 = vpop.f32.mrf.mxu0
    %v784 = vadd.f32 %v722, %v783
    %785 = vmatmul.f32.gmra.mxu0 %v729
    %v786 = vpop.f32.mrf.mxu0
    %v787 = vadd.f32 %v722, %v786
    %788 = vmatmul.f32.gmra.mxu0 %v732
    %v789 = vpop.f32.mrf.mxu0
    %v790 = vadd.f32 %v722, %v789
    %791 = vmatmul.f32.gmra.mxu0 %v735
    %v792 = vpop.f32.mrf.mxu0
    %v793 = vadd.f32 %v722, %v792
    %794 = vdwg.mxu0
    %795 = vst [vmem:[#allocation3] sm:$0xf] %v755
    %796 = vst [vmem:[#allocation3] sm:$0xf0] %v793
    %s797 = scalar_lea.vmem [#allocation3], 8
    %798 = vst [vmem:[%s797 - $0x4] sm:$0xf0] %v755
    %799 = vst [vmem:[%s797 + $0x4] sm:$0xf] %v793
    %s800 = scalar_lea.vmem [#allocation3], 16
    %801 = vst [vmem:[%s800] sm:$0xf] %v758
    %802 = vst [vmem:[%s800] sm:$0xf0] %v790
    %s803 = scalar_lea.vmem [#allocation3], 24
    %804 = vst [vmem:[%s803 - $0x4] sm:$0xf0] %v758
    %805 = vst [vmem:[%s803 + $0x4] sm:$0xf] %v790
    %s806 = scalar_lea.vmem [#allocation3], 32
    %807 = vst [vmem:[%s806] sm:$0xf] %v761
    %808 = vst [vmem:[%s806] sm:$0xf0] %v787
    %s809 = scalar_lea.vmem [#allocation3], 40
    %810 = vst [vmem:[%s809 - $0x4] sm:$0xf0] %v761
    %811 = vst [vmem:[%s809 + $0x4] sm:$0xf] %v787
    %s812 = scalar_lea.vmem [#allocation3], 48
    %813 = vst [vmem:[%s812] sm:$0xf] %v764
    %814 = vst [vmem:[%s812] sm:$0xf0] %v784
    %s815 = scalar_lea.vmem [#allocation3], 56
    %816 = vst [vmem:[%s815 - $0x4] sm:$0xf0] %v764
    %817 = vst [vmem:[%s815 + $0x4] sm:$0xf] %v784
    %v818 = vld [vmem:[#allocation3] sm:$0xff]
    %819 = vmatpush.msra.mxu0 0.0
    %820 = vmatpush.msra.mxu0 0.0
    %821 = vmatpush.msra.mxu0 0.0
    %822 = vmatpush.msra.mxu0 0.0
    %823 = vmatpush.msra.mxu0 0.0
    %824 = vmatpush.msra.mxu0 0.0
    %825 = vmatpush.msra.mxu0 0.0
    %826 = vmatpush.msra.mxu0 0.0
    %827 = vmatpush.msra.mxu0 %v109
    %828 = vmatpush.msra.mxu0 %v108
    %829 = vmatpush.msra.mxu0 %v107
    %830 = vmatpush.msra.mxu0 %v106
    %831 = vmatpush.msra.mxu0 %v105
    %832 = vmatpush.msra.mxu0 %v104
    %833 = vmatpush.msra.mxu0 %v103
    %834 = vmatpush.msra.mxu0 %v102
    %835 = vmatmul.f32.gmra.mxu0 %v243
    %v836 = vpop.f32.mrf.mxu0
    %v837 = vadd.f32 0.0, %v836
    %838 = vdwg.mxu0
    %v839 = vadd.f32 %v818, %v837
    %v840 = vtanh.pop %v839
    %v841 = vmul.f32 %v840, 0.5
    %v842 = vadd.f32 %v841, 0.5
    %v843 = vsel %vm270, %v842, %v840
    %v844 = vmul.f32 %v843, 0.0
    %846 = vrot.lane.b32.xlu0 %v843, 64
    %v847 = vpop.permute.xlu0 %846
    %v849 = vmul.f32 %v843, %v847
    %851 = vrot.lane.b32.xlu0 %v849, 32
    %v852 = vpop.permute.xlu0 %851
    %v854 = vadd.f32 %v844, %v852
    %v855 = vtanh.pop %v854
    %857 = vrot.lane.b32.xlu0 %v855, 64
    %v858 = vpop.permute.xlu0 %857
    %v860 = vmul.f32 %v843, %v858
    %862 = vrot.lane.b32.xlu0 %v860, 32
    %v863 = vpop.permute.xlu0 %862
    %865 = vrot.lane.b32.xlu0 %v860, 64
    %v866 = vpop.permute.xlu0 %865
    %v868 = vsel %vm146, %v863, %v866
    %v869 = vmul.f32 %v868, %v93
    %v870 = vld [vmem:[%s797] sm:$0xff]
    %v872 = vsel %vm241, %v869, 0
    %874 = vmatpush.msra.mxu0 0.0
    %875 = vmatpush.msra.mxu0 0.0
    %876 = vmatpush.msra.mxu0 0.0
    %877 = vmatpush.msra.mxu0 0.0
    %878 = vmatpush.msra.mxu0 0.0
    %879 = vmatpush.msra.mxu0 0.0
    %880 = vmatpush.msra.mxu0 0.0
    %881 = vmatpush.msra.mxu0 0.0
    %882 = vmatpush.msra.mxu0 %v109
    %883 = vmatpush.msra.mxu0 %v108
    %884 = vmatpush.msra.mxu0 %v107
    %885 = vmatpush.msra.mxu0 %v106
    %886 = vmatpush.msra.mxu0 %v105
    %887 = vmatpush.msra.mxu0 %v104
    %888 = vmatpush.msra.mxu0 %v103
    %889 = vmatpush.msra.mxu0 %v102
    %890 = vmatmul.f32.gmra.mxu0 %v872
    %v891 = vpop.f32.mrf.mxu0
    %v892 = vadd.f32 0.0, %v891
    %893 = vdwg.mxu0
    %v894 = vadd.f32 %v870, %v892
    %v895 = vtanh.pop %v894
    %v896 = vmul.f32 %v895, 0.5
    %v897 = vadd.f32 %v896, 0.5
    %v898 = vsel %vm270, %v897, %v895
    %v899 = vmul.f32 %v898, %v854
    %901 = vrot.lane.b32.xlu0 %v898, 64
    %v902 = vpop.permute.xlu0 %901
    %v904 = vmul.f32 %v898, %v902
    %906 = vrot.lane.b32.xlu0 %v904, 32
    %v907 = vpop.permute.xlu0 %906
    %v909 = vadd.f32 %v899, %v907
    %v910 = vtanh.pop %v909
    %912 = vrot.lane.b32.xlu0 %v910, 64
    %v913 = vpop.permute.xlu0 %912
    %v915 = vmul.f32 %v898, %v913
    %917 = vrot.lane.b32.xlu0 %v915, 32
    %v918 = vpop.permute.xlu0 %917
    %920 = vrot.lane.b32.xlu0 %v915, 64
    %v921 = vpop.permute.xlu0 %920
    %v923 = vsel %vm146, %v918, %v921
    %v924 = vmul.f32 %v923, %v93
    %v925 = vld [vmem:[%s800] sm:$0xff]
    %v927 = vsel %vm241, %v924, 0
    %929 = vmatpush.msra.mxu0 0.0
    %930 = vmatpush.msra.mxu0 0.0
    %931 = vmatpush.msra.mxu0 0.0
    %932 = vmatpush.msra.mxu0 0.0
    %933 = vmatpush.msra.mxu0 0.0
    %934 = vmatpush.msra.mxu0 0.0
    %935 = vmatpush.msra.mxu0 0.0
    %936 = vmatpush.msra.mxu0 0.0
    %937 = vmatpush.msra.mxu0 %v109
    %938 = vmatpush.msra.mxu0 %v108
    %939 = vmatpush.msra.mxu0 %v107
    %940 = vmatpush.msra.mxu0 %v106
    %941 = vmatpush.msra.mxu0 %v105
    %942 = vmatpush.msra.mxu0 %v104
    %943 = vmatpush.msra.mxu0 %v103
    %944 = vmatpush.msra.mxu0 %v102
    %945 = vmatmul.f32.gmra.mxu0 %v927
    %v946 = vpop.f32.mrf.mxu0
    %v947 = vadd.f32 0.0, %v946
    %948 = vdwg.mxu0
    %v949 = vadd.f32 %v925, %v947
    %v950 = vtanh.pop %v949
    %v951 = vmul.f32 %v950, 0.5
    %v952 = vadd.f32 %v951, 0.5
    %v953 = vsel %vm270, %v952, %v950
    %v954 = vmul.f32 %v953, %v909
    %956 = vrot.lane.b32.xlu0 %v953, 64
    %v957 = vpop.permute.xlu0 %956
    %v959 = vmul.f32 %v953, %v957
    %961 = vrot.lane.b32.xlu0 %v959, 32
    %v962 = vpop.permute.xlu0 %961
    %v964 = vadd.f32 %v954, %v962
    %v965 = vtanh.pop %v964
    %967 = vrot.lane.b32.xlu0 %v965, 64
    %v968 = vpop.permute.xlu0 %967
    %v970 = vmul.f32 %v953, %v968
    %972 = vrot.lane.b32.xlu0 %v970, 32
    %v973 = vpop.permute.xlu0 %972
    %975 = vrot.lane.b32.xlu0 %v970, 64
    %v976 = vpop.permute.xlu0 %975
    %v978 = vsel %vm146, %v973, %v976
    %v979 = vmul.f32 %v978, %v93
    %v980 = vld [vmem:[%s803] sm:$0xff]
    %v982 = vsel %vm241, %v979, 0
    %984 = vmatpush.msra.mxu0 0.0
    %985 = vmatpush.msra.mxu0 0.0
    %986 = vmatpush.msra.mxu0 0.0
    %987 = vmatpush.msra.mxu0 0.0
    %988 = vmatpush.msra.mxu0 0.0
    %989 = vmatpush.msra.mxu0 0.0
    %990 = vmatpush.msra.mxu0 0.0
    %991 = vmatpush.msra.mxu0 0.0
    %992 = vmatpush.msra.mxu0 %v109
    %993 = vmatpush.msra.mxu0 %v108
    %994 = vmatpush.msra.mxu0 %v107
    %995 = vmatpush.msra.mxu0 %v106
    %996 = vmatpush.msra.mxu0 %v105
    %997 = vmatpush.msra.mxu0 %v104
    %998 = vmatpush.msra.mxu0 %v103
    %999 = vmatpush.msra.mxu0 %v102
    %1000 = vmatmul.f32.gmra.mxu0 %v982
    %v1001 = vpop.f32.mrf.mxu0
    %v1002 = vadd.f32 0.0, %v1001
    %1003 = vdwg.mxu0
    %v1004 = vadd.f32 %v980, %v1002
    %v1005 = vtanh.pop %v1004
    %v1006 = vmul.f32 %v1005, 0.5
    %v1007 = vadd.f32 %v1006, 0.5
    %v1008 = vsel %vm270, %v1007, %v1005
    %v1009 = vmul.f32 %v1008, %v964
    %1011 = vrot.lane.b32.xlu0 %v1008, 64
    %v1012 = vpop.permute.xlu0 %1011
    %v1014 = vmul.f32 %v1008, %v1012
    %1016 = vrot.lane.b32.xlu0 %v1014, 32
    %v1017 = vpop.permute.xlu0 %1016
    %v1019 = vadd.f32 %v1009, %v1017
    %v1020 = vtanh.pop %v1019
    %1022 = vrot.lane.b32.xlu0 %v1020, 64
    %v1023 = vpop.permute.xlu0 %1022
    %v1025 = vmul.f32 %v1008, %v1023
    %1027 = vrot.lane.b32.xlu0 %v1025, 32
    %v1028 = vpop.permute.xlu0 %1027
    %1030 = vrot.lane.b32.xlu0 %v1025, 64
    %v1031 = vpop.permute.xlu0 %1030
    %v1033 = vsel %vm146, %v1028, %v1031
    %v1034 = vmul.f32 %v1033, %v93
    %v1035 = vld [vmem:[%s806] sm:$0xff]
    %v1037 = vsel %vm241, %v1034, 0
    %1039 = vmatpush.msra.mxu0 0.0
    %1040 = vmatpush.msra.mxu0 0.0
    %1041 = vmatpush.msra.mxu0 0.0
    %1042 = vmatpush.msra.mxu0 0.0
    %1043 = vmatpush.msra.mxu0 0.0
    %1044 = vmatpush.msra.mxu0 0.0
    %1045 = vmatpush.msra.mxu0 0.0
    %1046 = vmatpush.msra.mxu0 0.0
    %1047 = vmatpush.msra.mxu0 %v109
    %1048 = vmatpush.msra.mxu0 %v108
    %1049 = vmatpush.msra.mxu0 %v107
    %1050 = vmatpush.msra.mxu0 %v106
    %1051 = vmatpush.msra.mxu0 %v105
    %1052 = vmatpush.msra.mxu0 %v104
    %1053 = vmatpush.msra.mxu0 %v103
    %1054 = vmatpush.msra.mxu0 %v102
    %1055 = vmatmul.f32.gmra.mxu0 %v1037
    %v1056 = vpop.f32.mrf.mxu0
    %v1057 = vadd.f32 0.0, %v1056
    %1058 = vdwg.mxu0
    %v1059 = vadd.f32 %v1035, %v1057
    %v1060 = vtanh.pop %v1059
    %v1061 = vmul.f32 %v1060, 0.5
    %v1062 = vadd.f32 %v1061, 0.5
    %v1063 = vsel %vm270, %v1062, %v1060
    %v1064 = vmul.f32 %v1063, %v1019
    %1066 = vrot.lane.b32.xlu0 %v1063, 64
    %v1067 = vpop.permute.xlu0 %1066
    %v1069 = vmul.f32 %v1063, %v1067
    %1071 = vrot.lane.b32.xlu0 %v1069, 32
    %v1072 = vpop.permute.xlu0 %1071
    %v1074 = vadd.f32 %v1064, %v1072
    %v1075 = vtanh.pop %v1074
    %1077 = vrot.lane.b32.xlu0 %v1075, 64
    %v1078 = vpop.permute.xlu0 %1077
    %v1080 = vmul.f32 %v1063, %v1078
    %1082 = vrot.lane.b32.xlu0 %v1080, 32
    %v1083 = vpop.permute.xlu0 %1082
    %1085 = vrot.lane.b32.xlu0 %v1080, 64
    %v1086 = vpop.permute.xlu0 %1085
    %v1088 = vsel %vm146, %v1083, %v1086
    %v1089 = vmul.f32 %v1088, %v93
    %v1090 = vld [vmem:[%s809] sm:$0xff]
    %v1092 = vsel %vm241, %v1089, 0
    %1094 = vmatpush.msra.mxu0 0.0
    %1095 = vmatpush.msra.mxu0 0.0
    %1096 = vmatpush.msra.mxu0 0.0
    %1097 = vmatpush.msra.mxu0 0.0
    %1098 = vmatpush.msra.mxu0 0.0
    %1099 = vmatpush.msra.mxu0 0.0
    %1100 = vmatpush.msra.mxu0 0.0
    %1101 = vmatpush.msra.mxu0 0.0
    %1102 = vmatpush.msra.mxu0 %v109
    %1103 = vmatpush.msra.mxu0 %v108
    %1104 = vmatpush.msra.mxu0 %v107
    %1105 = vmatpush.msra.mxu0 %v106
    %1106 = vmatpush.msra.mxu0 %v105
    %1107 = vmatpush.msra.mxu0 %v104
    %1108 = vmatpush.msra.mxu0 %v103
    %1109 = vmatpush.msra.mxu0 %v102
    %1110 = vmatmul.f32.gmra.mxu0 %v1092
    %v1111 = vpop.f32.mrf.mxu0
    %v1112 = vadd.f32 0.0, %v1111
    %1113 = vdwg.mxu0
    %v1114 = vadd.f32 %v1090, %v1112
    %v1115 = vtanh.pop %v1114
    %v1116 = vmul.f32 %v1115, 0.5
    %v1117 = vadd.f32 %v1116, 0.5
    %v1118 = vsel %vm270, %v1117, %v1115
    %v1119 = vmul.f32 %v1118, %v1074
    %1121 = vrot.lane.b32.xlu0 %v1118, 64
    %v1122 = vpop.permute.xlu0 %1121
    %v1124 = vmul.f32 %v1118, %v1122
    %1126 = vrot.lane.b32.xlu0 %v1124, 32
    %v1127 = vpop.permute.xlu0 %1126
    %v1129 = vadd.f32 %v1119, %v1127
    %v1130 = vtanh.pop %v1129
    %1132 = vrot.lane.b32.xlu0 %v1130, 64
    %v1133 = vpop.permute.xlu0 %1132
    %v1135 = vmul.f32 %v1118, %v1133
    %1137 = vrot.lane.b32.xlu0 %v1135, 32
    %v1138 = vpop.permute.xlu0 %1137
    %1140 = vrot.lane.b32.xlu0 %v1135, 64
    %v1141 = vpop.permute.xlu0 %1140
    %v1143 = vsel %vm146, %v1138, %v1141
    %v1144 = vmul.f32 %v1143, %v93
    %v1145 = vld [vmem:[%s812] sm:$0xff]
    %v1147 = vsel %vm241, %v1144, 0
    %1149 = vmatpush.msra.mxu0 0.0
    %1150 = vmatpush.msra.mxu0 0.0
    %1151 = vmatpush.msra.mxu0 0.0
    %1152 = vmatpush.msra.mxu0 0.0
    %1153 = vmatpush.msra.mxu0 0.0
    %1154 = vmatpush.msra.mxu0 0.0
    %1155 = vmatpush.msra.mxu0 0.0
    %1156 = vmatpush.msra.mxu0 0.0
    %1157 = vmatpush.msra.mxu0 %v109
    %1158 = vmatpush.msra.mxu0 %v108
    %1159 = vmatpush.msra.mxu0 %v107
    %1160 = vmatpush.msra.mxu0 %v106
    %1161 = vmatpush.msra.mxu0 %v105
    %1162 = vmatpush.msra.mxu0 %v104
    %1163 = vmatpush.msra.mxu0 %v103
    %1164 = vmatpush.msra.mxu0 %v102
    %1165 = vmatmul.f32.gmra.mxu0 %v1147
    %v1166 = vpop.f32.mrf.mxu0
    %v1167 = vadd.f32 0.0, %v1166
    %1168 = vdwg.mxu0
    %v1169 = vadd.f32 %v1145, %v1167
    %v1170 = vtanh.pop %v1169
    %v1171 = vmul.f32 %v1170, 0.5
    %v1172 = vadd.f32 %v1171, 0.5
    %v1173 = vsel %vm270, %v1172, %v1170
    %v1174 = vmul.f32 %v1173, %v1129
    %1176 = vrot.lane.b32.xlu0 %v1173, 64
    %v1177 = vpop.permute.xlu0 %1176
    %v1179 = vmul.f32 %v1173, %v1177
    %1181 = vrot.lane.b32.xlu0 %v1179, 32
    %v1182 = vpop.permute.xlu0 %1181
    %v1184 = vadd.f32 %v1174, %v1182
    %v1185 = vtanh.pop %v1184
    %1187 = vrot.lane.b32.xlu0 %v1185, 64
    %v1188 = vpop.permute.xlu0 %1187
    %v1190 = vmul.f32 %v1173, %v1188
    %1192 = vrot.lane.b32.xlu0 %v1190, 32
    %v1193 = vpop.permute.xlu0 %1192
    %1195 = vrot.lane.b32.xlu0 %v1190, 64
    %v1196 = vpop.permute.xlu0 %1195
    %v1198 = vsel %vm146, %v1193, %v1196
    %v1199 = vmul.f32 %v1198, %v93
    %v1200 = vld [vmem:[%s815] sm:$0xff]
    %v1202 = vsel %vm241, %v1199, 0
    %1204 = vmatpush.msra.mxu0 0.0
    %1205 = vmatpush.msra.mxu0 0.0
    %1206 = vmatpush.msra.mxu0 0.0
    %1207 = vmatpush.msra.mxu0 0.0
    %1208 = vmatpush.msra.mxu0 0.0
    %1209 = vmatpush.msra.mxu0 0.0
    %1210 = vmatpush.msra.mxu0 0.0
    %1211 = vmatpush.msra.mxu0 0.0
    %1212 = vmatpush.msra.mxu0 %v109
    %1213 = vmatpush.msra.mxu0 %v108
    %1214 = vmatpush.msra.mxu0 %v107
    %1215 = vmatpush.msra.mxu0 %v106
    %1216 = vmatpush.msra.mxu0 %v105
    %1217 = vmatpush.msra.mxu0 %v104
    %1218 = vmatpush.msra.mxu0 %v103
    %1219 = vmatpush.msra.mxu0 %v102
    %1220 = vmatmul.f32.gmra.mxu0 %v1202
    %v1221 = vpop.f32.mrf.mxu0
    %v1222 = vadd.f32 0.0, %v1221
    %1223 = vdwg.mxu0
    %v1224 = vadd.f32 %v1200, %v1222
    %v1225 = vtanh.pop %v1224
    %v1226 = vmul.f32 %v1225, 0.5
    %v1227 = vadd.f32 %v1226, 0.5
    %v1228 = vsel %vm270, %v1227, %v1225
    %v1229 = vmul.f32 %v1228, %v1184
    %1231 = vrot.lane.b32.xlu0 %v1228, 64
    %v1232 = vpop.permute.xlu0 %1231
    %v1234 = vmul.f32 %v1228, %v1232
    %1236 = vrot.lane.b32.xlu0 %v1234, 32
    %v1237 = vpop.permute.xlu0 %1236
    %v1239 = vadd.f32 %v1229, %v1237
    %v1240 = vtanh.pop %v1239
    %1242 = vrot.lane.b32.xlu0 %v1240, 64
    %v1243 = vpop.permute.xlu0 %1242
    %v1245 = vmul.f32 %v1228, %v1243
    %1247 = vrot.lane.b32.xlu0 %v1245, 32
    %v1248 = vpop.permute.xlu0 %1247
    %1250 = vrot.lane.b32.xlu0 %v1245, 64
    %v1251 = vpop.permute.xlu0 %1250
    %v1253 = vsel %vm146, %v1248, %v1251
    %v1254 = vmul.f32 %v1253, %v93
    %v1256 = vrot.slane %v1254, 4
    %v1258 = vadd.f32 %v1254, %v1256
    %v1259 = vld [vmem:[#allocation9] sm:$0xff]
    %v1260 = vld [vmem:[#allocation9 + $0x8] sm:$0xff]
    %v1261 = vld [vmem:[#allocation9 + $0x10] sm:$0xff]
    %v1262 = vld [vmem:[#allocation9 + $0x18] sm:$0xff]
    %v1263 = vld [vmem:[#allocation9 + $0x20] sm:$0xff]
    %v1264 = vld [vmem:[#allocation9 + $0x28] sm:$0xff]
    %v1265 = vld [vmem:[#allocation9 + $0x30] sm:$0xff]
    %v1266 = vld [vmem:[#allocation9 + $0x38] sm:$0xff]
    %v1267 = vld [vmem:[%s7] sm:$0x1]
    %v1269 = vperm.slane %v1267, 0
    %v1272 = vsel %vm241, %v1258, 0
    %1274 = vmatpush.msra.mxu0 0.0
    %1275 = vmatpush.msra.mxu0 0.0
    %1276 = vmatpush.msra.mxu0 0.0
    %1277 = vmatpush.msra.mxu0 0.0
    %1278 = vmatpush.msra.mxu0 0.0
    %1279 = vmatpush.msra.mxu0 0.0
    %1280 = vmatpush.msra.mxu0 0.0
    %1281 = vmatpush.msra.mxu0 0.0
    %1282 = vmatpush.msra.mxu0 %v1266
    %1283 = vmatpush.msra.mxu0 %v1265
    %1284 = vmatpush.msra.mxu0 %v1264
    %1285 = vmatpush.msra.mxu0 %v1263
    %1286 = vmatpush.msra.mxu0 %v1262
    %1287 = vmatpush.msra.mxu0 %v1261
    %1288 = vmatpush.msra.mxu0 %v1260
    %1289 = vmatpush.msra.mxu0 %v1259
    %1290 = vmatmul.f32.gmra.mxu0 %v1272
    %v1291 = vpop.f32.mrf.mxu0
    %v1292 = vadd.f32 %v1269, %v1291
    %1293 = vdwg.mxu0
    %v1294 = vmax.f32 %v1292, 0.0
    %v1295 = vld [vmem:[%s8] sm:$0xff]
    %v1296 = vld [vmem:[%s8 + $0x8] sm:$0xff]
    %v1297 = vld [vmem:[%s8 + $0x10] sm:$0xff]
    %v1298 = vld [vmem:[%s8 + $0x18] sm:$0xff]
    %v1299 = vld [vmem:[%s8 + $0x20] sm:$0xff]
    %v1300 = vld [vmem:[%s8 + $0x28] sm:$0xff]
    %v1301 = vld [vmem:[%s8 + $0x30] sm:$0xff]
    %v1302 = vld [vmem:[%s8 + $0x38] sm:$0xff]
    %v1303 = vld [vmem:[%s8 + $0x40] sm:$0xff]
    %v1304 = vld [vmem:[%s8 + $0x48] sm:$0xff]
    %v1305 = vld [vmem:[%s8 + $0x50] sm:$0xff]
    %v1306 = vld [vmem:[%s8 + $0x58] sm:$0xff]
    %v1307 = vld [vmem:[%s8 + $0x60] sm:$0xff]
    %v1308 = vld [vmem:[%s8 + $0x68] sm:$0xff]
    %v1309 = vld [vmem:[%s8 + $0x70] sm:$0xff]
    %v1310 = vld [vmem:[%s8 + $0x78] sm:$0xff]
    %v1311 = vld [vmem:[%s9] sm:$0x1]
    %v1313 = vperm.slane %v1311, 0
    %1315 = vmatpush.msra.mxu0 %v1310
    %1316 = vmatpush.msra.mxu0 %v1309
    %1317 = vmatpush.msra.mxu0 %v1308
    %1318 = vmatpush.msra.mxu0 %v1307
    %1319 = vmatpush.msra.mxu0 %v1306
    %1320 = vmatpush.msra.mxu0 %v1305
    %1321 = vmatpush.msra.mxu0 %v1304
    %1322 = vmatpush.msra.mxu0 %v1303
    %1323 = vmatpush.msra.mxu0 %v1302
    %1324 = vmatpush.msra.mxu0 %v1301
    %1325 = vmatpush.msra.mxu0 %v1300
    %1326 = vmatpush.msra.mxu0 %v1299
    %1327 = vmatpush.msra.mxu0 %v1298
    %1328 = vmatpush.msra.mxu0 %v1297
    %1329 = vmatpush.msra.mxu0 %v1296
    %1330 = vmatpush.msra.mxu0 %v1295
    %1331 = vmatmul.f32.gmra.mxu0 %v1294
    %v1332 = vpop.f32.mrf.mxu0
    %v1333 = vadd.f32 %v1313, %v1332
    %1334 = vdwg.mxu0
    %v1336 = vrot.slane %v1333, 2
    %v1338 = vmul.f32 %v1333, %v1336
    %vm1339 = vcmask 517120
    %v1340 = vsel %vm1339, %v1338, 0.0
    %1341 = vadd.xlane.f32.xlu0 %v1340
    %v1342 = vpop.xlane.xlu0 %1341
    %v1343 = vmul.f32 %v1333, %v1333
    %v1344 = vsel %vm1339, %v1343, 0.0
    %1345 = vadd.xlane.f32.xlu0 %v1344
    %v1346 = vpop.xlane.xlu0 %1345
    %vm1347 = vcmask 519170
    %v1348 = vsel %vm1347, %v1343, 0.0
    %1349 = vadd.xlane.f32.xlu0 %v1348
    %v1350 = vpop.xlane.xlu0 %1349
    %v1352 = vrot.slane %v1350, 2
    %v1354 = vmul.f32 %v1346, %v1352
    %v1355 = vrsqrt.pop %v1354
    %v1356 = vmul.f32 %v1355, %v1354
    %v1357 = vmul.f32 %v1356, %v1355
    %v1358 = vmul.f32 0.5, %v1357
    %v1359 = vsub.f32 1.5, %v1358
    %v1360 = vmul.f32 %v1355, %v1359
    %v1361 = vmul.f32 %v1354, %v1360
    %vm1362 = vcmp.eq.f32.partialorder %v1354, inf
    %v1363 = vsel %vm1362, %v1354, %v1361
    %vm1364 = vcmp.eq.f32.partialorder %v1354, 0.0
    %v1365 = vand.u32 %v1354, 2147483648
    %v1366 = vsel %vm1364, %v1365, %v1363
    %v1367 = vmax.f32 %v1366, 1e-08
    %v1368 = vrcp.pop %v1367
    %v1369 = vmul.f32 %v1367, %v1368
    %v1370 = vsub.f32 1.0, %v1369
    %v1371 = vmul.f32 %v1368, %v1370
    %v1372 = vadd.f32 %v1368, %v1371
    %vm1373 = vweird.f32 %v1367
    %vm1374 = vweird.f32 %v1368
    %vm1375 = vmor %vm1373, %vm1374
    %v1376 = vsel %vm1375, %v1368, %v1372
    %v1377 = vand.u32 2147483647, %v1367
    %vm1378 = vcmp.eq.f32.partialorder %v1377, 8.507059e+37
    %v1379 = vand.u32 %v1367, 2147483648
    %v1380 = vor.u32 1.1754944e-38, %v1379
    %v1381 = vsel %vm1378, %v1380, %v1376
    %v1382 = vmul.f32 %v1342, %v1381
    %vm1383 = vcmask 1024
    %1384 = vst.msk [vmem:[%s10] sm:$0x3] %vm1383, %v1382
    // Predicated region
    $region54: #{tpu_custom_call.1} parent=1 // pred_check
      _
    $region55: #{tpu_custom_call.1} parent=1 // pred_check_branch
      %1386 = sbr.rel (0) target = $region57
    $region56: #{tpu_custom_call.1} parent=1 // pred_region
      _
    $region57: #{tpu_custom_call.1} parent=1 // pred_fallthru
      _
    // Predicated region
    $region58: #{tpu_custom_call.1} parent=1 // pred_check
      _
    $region59: #{tpu_custom_call.1} parent=1 // pred_check_branch
      %1388 = sbr.rel (0) target = $region61
    $region60: #{tpu_custom_call.1} parent=1 // pred_region
      _
    $region61: #{tpu_custom_call.1} parent=1 // pred_fallthru
      _
    %1389 = vsyncpa [#allocation6], 1
    %1390 = vsyncpa [#allocation8], 1

</llo_original>
